<compile_context>
chip_gen: v7x
topology: tpu7x:2x2x1
jax: 0.10.0
libtpu: 0.0.40
codegen_flags: <defaults>
</compile_context>

<pallas_src>
import functools

import jax
import jax.numpy as jnp
from jax import lax
from jax.experimental import pallas as pl
from jax.experimental.pallas import tpu as pltpu

# ---------------- synthetic small config (stand-in for 2048-d ResNet-50) -------
B = 2            # batch
C_IN = 4         # input channels
H = W = 16       # input spatial size
C_FEAT = 64      # backbone output channels (stand-in for 2048)
RED_DIM = 32     # whitening reduction_dim (stand-in for 2048)
N_DB = 64        # synthetic vector-db size
TOP_X, M_RERANK, K_RERANK, BETA = 3, 10, 10, 2.0

RGEM_P, RGEM_SIZE = 2.5, 5        # Rgem (regional GeM, SuperGlobal paper defaults)
GEMP_P, GEMP_EPS = 4.6, 1e-8      # Gemp (generalized mean pooling)
L2_EPS = 1e-12                    # F.normalize eps
_PAD = (RGEM_SIZE - 1) // 2


def _l2n(x):
    """F.normalize(x, p=2, dim=-1) via rsqrt (EUP) instead of sqrt+divide."""
    ss = jnp.sum(x * x, axis=-1, keepdims=True)
    return x * lax.rsqrt(jnp.maximum(ss, L2_EPS * L2_EPS))


# ---------------- fused per-scale kernel ----------------------------------------
def _scale_kernel(xpad_ref, w_bb_ref, b_bb_ref, w_wh_ref, b_wh_ref, o_ref, *, hs, ws):
    """backbone(1x1 conv+ReLU) -> Rgem -> Gemp -> L2 -> whitening -> Sgem-normalize.

    One grid program per batch element; everything stays in VMEM/vregs.
    xpad_ref: [1, hs+4, ws+4, C_IN] reflect-padded resized input (channels-last).
    o_ref:    [1, 1, RED_DIM] per-scale, L2-normalized whitened descriptor.
    """
    hp, wp = hs + 2 * _PAD, ws + 2 * _PAD
    x = xpad_ref[0]                                   # [hp, wp, C_IN]
    w_bb = w_bb_ref[...]                              # [C_IN, C_FEAT]

    # TODO(synk): GlobalNetwork's ResNet-50 stem/layer1-4 are not provided in the
    # source; replaced by a deterministic pointwise (1x1 conv + ReLU) stand-in.
    # K=C_IN=4 is far too small for the 128/256-deep MXU -> C_IN outer-product adds
    # on the VPU (no reshape, channel dim stays on lanes).
    acc = jnp.zeros((hp, wp, C_FEAT), jnp.float32)
    for c in range(C_IN):
        acc = acc + x[:, :, c:c + 1] * w_bb[c:c + 1, :][None, :, :]
    feat = jnp.maximum(acc + b_bb_ref[...][None, :, :], 0.0)      # [hp, wp, C_FEAT]

    # ---- Rgem: 0.5 * LPPool2d(p,5)(reflect_pad(x / nom)) + 0.5 * x.
    # pow hoisted out of the window loop (1 transcendental pass instead of 25) and
    # the 5x5 window sum done separably (4 W-shifted + 4 H-shifted adds).
    nom = float(RGEM_SIZE * RGEM_SIZE) ** (1.0 / RGEM_P)
    xp = jnp.power(feat, RGEM_P)
    cs = xp[:, 0:ws, :]
    for j in range(1, RGEM_SIZE):                     # W (sublane) shifts
        cs = cs + xp[:, j:j + ws, :]
    rs = cs[0:hs, :, :]
    for i in range(1, RGEM_SIZE):                     # H (leading-dim) shifts, cheap
        rs = rs + cs[i:i + hs, :, :]
    pooled = jnp.power(rs, 1.0 / RGEM_P) * (1.0 / nom)
    rg = 0.5 * pooled + 0.5 * feat[_PAD:_PAD + hs, _PAD:_PAD + ws, :]   # [hs, ws, C]

    # ---- Gemp (channels-last: C on lanes; spatial mean = leading-axis adds).
    g = jnp.power(jnp.maximum(rg, GEMP_EPS), GEMP_P)
    g = jnp.sum(g, axis=0)                            # [ws, C_FEAT]
    g = jnp.sum(g, axis=0, keepdims=True) * (1.0 / float(hs * ws))      # [1, C_FEAT]
    g = jnp.power(g, 1.0 / GEMP_P)

    # ---- L2 normalize (rsqrt) + whitening Linear on the MXU in bf16 (f32 accum).
    g = _l2n(g)
    d = jnp.dot(g.astype(jnp.bfloat16), w_wh_ref[...].astype(jnp.bfloat16),
                preferred_element_type=jnp.float32) + b_wh_ref[...]     # [1, RED_DIM]

    # ---- Sgem's per-scale L2 normalize folded in (max across scales done in glue).
    o_ref[...] = _l2n(d)[None]                        # [1, 1, RED_DIM]


def _run_scale(xpad, params, hs, ws):
    hp, wp = hs + 2 * _PAD, ws + 2 * _PAD
    out = jax.ShapeDtypeStruct((B, 1, RED_DIM), jnp.float32)
    desc = pl.pallas_call(
        functools.partial(_scale_kernel, hs=hs, ws=ws),
        out_shape=out,
        grid=(B,),
        in_specs=[
            pl.BlockSpec((1, hp, wp, C_IN), lambda b: (b, 0, 0, 0)),
            pl.BlockSpec((C_IN, C_FEAT), lambda b: (0, 0)),
            pl.BlockSpec((1, C_FEAT), lambda b: (0, 0)),
            pl.BlockSpec((C_FEAT, RED_DIM), lambda b: (0, 0)),
            pl.BlockSpec((1, RED_DIM), lambda b: (0, 0)),
        ],
        out_specs=pl.BlockSpec((1, 1, RED_DIM), lambda b: (b, 0, 0)),
        compiler_params=pltpu.CompilerParams(dimension_semantics=("parallel",)),
    )(xpad, params["w_bb"], params["b_bb"].reshape(1, C_FEAT),
      params["w_wh"], params["b_wh"].reshape(1, RED_DIM))
    return desc[:, 0, :]                              # [B, RED_DIM]


# ---------------- SuperGlobalNetwork forward ------------------------------------
def global_network_forward(x_nchw, params):
    # scale=3 branch of SuperGlobalNetwork.forward
    scales = [0.7071, 1.0, 1.4142]
    x_nhwc = jnp.transpose(x_nchw, (0, 2, 3, 1))      # single tiny-input transpose
    descs = []
    for scl in scales:
        hs = int(x_nchw.shape[-2] * scl)
        ws = int(x_nchw.shape[-1] * scl)
        x_r = jax.image.resize(x_nhwc, (B, hs, ws, C_IN), method="bilinear")
        # Reflect-pad commutes with the pointwise backbone stand-in, so pad the
        # resized input here and build the padded feature map inside the fused kernel
        # (Rgem's ReflectionPad2d on the feature map is reproduced exactly).
        xpad = jnp.pad(x_r, ((0, 0), (_PAD, _PAD), (_PAD, _PAD), (0, 0)),
                       mode="reflect")
        descs.append(_run_scale(xpad, params, hs, ws))
    # Sgem (infinity variant): each scale already L2-normalized inside the kernel;
    # elementwise max across the 3 tiny [B, RED_DIM] descriptors stays in glue.
    return functools.reduce(jnp.maximum, descs)


# ---------------- similarity matmul (query x DB), tiled over the DB axis --------
def _sim_kernel(q_ref, db_ref, o_ref):
    q = q_ref[...].astype(jnp.bfloat16)               # [n, D]
    d = db_ref[...].astype(jnp.bfloat16)              # [tn, D]
    o_ref[...] = lax.dot_general(q, d, (((1,), (1,)), ((), ())),
                                 preferred_element_type=jnp.float32)


def pallas_similarity(queries, db):
    n, dim = queries.shape
    ndb = db.shape[0]
    tn = ndb if ndb <= 512 else 512                   # lane-dense output tiles
    return pl.pallas_call(
        _sim_kernel,
        out_shape=jax.ShapeDtypeStruct((n, ndb), jnp.float32),
        grid=(pl.cdiv(ndb, tn),),
        in_specs=[pl.BlockSpec((n, dim), lambda j: (0, 0)),
                  pl.BlockSpec((tn, dim), lambda j: (j, 0))],
        out_specs=pl.BlockSpec((n, tn), lambda j: (0, j)),
        compiler_params=pltpu.CompilerParams(dimension_semantics=("parallel",)),
    )(queries, db)


# ---------------- rerank score kernel --------------------------------------------
def _rerank_score_kernel(topkm_ref, scores_ref, q_ref, qtk_ref, o_ref, *, beta):
    topkm = topkm_ref[...]            # [B, M, K, D]
    scores = scores_ref[...]          # [B, M, K]
    q = q_ref[...]                    # [B, D]
    qtk = qtk_ref[...]                # [B, D]
    weights = scores * beta           # matches torch: top_k_m_scores * self.beta
    # K sits on sublanes (D stays on lanes): cheap VPU multiply + sublane reduce.
    weighted_sum = jnp.sum(topkm * weights[..., None], axis=2)          # [B, M, D]
    norm_fac = 1.0 + jnp.sum(weights, axis=2, keepdims=True)            # [B, M, 1]
    refined = weighted_sum * pl.reciprocal(norm_fac, approx=True)
    refined = _l2n(refined)
    qtk_n = _l2n(qtk)
    # score_1 / score_2 as batched MXU contractions over D (flash-attn einsum pattern)
    # instead of broadcast-multiply + cross-lane reduces.
    s1 = jnp.einsum('bmd,bkd->bmk', refined, q[:, None, :],
                    preferred_element_type=jnp.float32)[:, :, 0]        # [B, M]
    s2 = jnp.einsum('bmd,bkd->bmk', refined, qtk_n[:, None, :],
                    preferred_element_type=jnp.float32)[:, :, 0]        # [B, M]
    # TODO(synk): at production M_RERANK, pad the [B, M] output to a multiple of 128
    # lanes to avoid masked partial stores.
    o_ref[...] = 0.5 * (s1 + s2)


# ---------------- SuperGlobalRerank forward -------------------------------------
def get_top_k(queries, db, k):
    # TODO(synk): vector_db implementation not provided; synthetic in-memory DB with
    # dot-product similarity (bf16 Pallas matmul); top-k + gather stay in JAX glue.
    sims = pallas_similarity(queries, db)             # [n, N_DB]
    scores, ids = jax.lax.top_k(sims, k)
    vecs = db[ids]
    return ids, scores, vecs


def rerank_forward(q, db):
    bsz, dim = q.shape
    top_m_ids, _top_m_scores, top_m = get_top_k(q, db, M_RERANK)  # [B,M],[B,M],[B,M,D]
    top_k = top_m[:, :K_RERANK - 1]                               # [B, K-1, D]
    query_top_k = jnp.max(
        jnp.concatenate([q[:, None, :], top_k], axis=1), axis=1)  # [B, D]
    flat = top_m.reshape(-1, dim)                                 # [B*M, D]
    _, s2, v2 = get_top_k(flat, db, K_RERANK - 1)
    top_k_m_scores = s2.reshape(bsz, M_RERANK, K_RERANK - 1)      # [B, M, K-1]
    top_k_m = v2.reshape(bsz, M_RERANK, K_RERANK - 1, dim)        # [B, M, K-1, D]
    expanded_q = jnp.broadcast_to(q[:, None, None, :], (bsz, M_RERANK, 1, dim))
    top_k_m = jnp.concatenate([expanded_q, top_k_m], axis=2)      # [B, M, K, D]
    ones = jnp.ones((bsz, M_RERANK, 1), jnp.float32)
    scores_cat = jnp.concatenate([ones, top_k_m_scores], axis=2)  # [B, M, K]
    final_scores = pl.pallas_call(
        functools.partial(_rerank_score_kernel, beta=BETA),
        out_shape=jax.ShapeDtypeStruct((bsz, M_RERANK), jnp.float32),
    )(top_k_m, scores_cat, q, query_top_k)
    top_x_scores, top_x_idx = jax.lax.top_k(final_scores, TOP_X)
    # reproduces PyTorch's `top_m_ids[top_x_indices]` advanced indexing -> [B, top_x, M]
    return top_m_ids[top_x_idx], top_x_scores


# ---------------- SuperGlobal ----------------------------------------------------
def superglobal_forward(x, params):
    global_features = global_network_forward(x, params)
    return rerank_forward(global_features, params["db"])


def init_params(key):
    k1, k2, k3, k4, k5 = jax.random.split(key, 5)
    w_bb = jax.random.normal(k1, (C_IN, C_FEAT), jnp.float32) * 0.1
    b_bb = jax.random.normal(k2, (C_FEAT,), jnp.float32) * 0.01
    w_wh = jax.random.normal(k3, (C_FEAT, RED_DIM), jnp.float32) * 0.05
    b_wh = jax.random.normal(k4, (RED_DIM,), jnp.float32) * 0.01
    db = jax.random.normal(k5, (N_DB, RED_DIM), jnp.float32)
    db = db / jnp.maximum(jnp.linalg.norm(db, axis=-1, keepdims=True), L2_EPS)
    return dict(w_bb=w_bb, b_bb=b_bb, w_wh=w_wh, b_wh=b_wh, db=db)


if __name__ == "__main__":
    key = jax.random.PRNGKey(0)
    kx, kp = jax.random.split(key)
    x = jax.random.normal(kx, (B, C_IN, H, W), jnp.float32)   # NCHW like PyTorch
    params = init_params(kp)
    top_x_ids, top_x_scores = superglobal_forward(x, params)
    jax.block_until_ready((top_x_ids, top_x_scores))
    assert top_x_ids.shape == (B, TOP_X, M_RERANK)
    assert top_x_scores.shape == (B, TOP_X)
    print("KERNEL_OK")
</pallas_src>

<mosaic_0001>
module attributes {stable_mosaic.version = 11 : i64} {
  func.func @_scale_kernel(%arg0: i32, %arg1: memref<1x15x15x4xf32, #tpu.memory_space<vmem>>, %arg2: memref<4x64xf32, #tpu.memory_space<vmem>>, %arg3: memref<1x64xf32, #tpu.memory_space<vmem>>, %arg4: memref<64x32xf32, #tpu.memory_space<vmem>>, %arg5: memref<1x32xf32, #tpu.memory_space<vmem>>, %arg6: memref<1x1x32xf32, #tpu.memory_space<vmem>>) attributes {dimension_semantics = [#tpu.dimension_semantics<parallel>], iteration_bounds = array<i64: 2>, scalar_prefetch = 0 : i64, scratch_operands = 0 : i64, tpu.core_type = #tpu.core_type<tc>, window_params = [{transform_indices = @transform_0, window_bounds = array<i64: 1, 15, 15, 4>}, {pipeline_mode = #tpu.pipeline_mode<synchronous>, transform_indices = @transform_1, window_bounds = array<i64: 4, 64>}, {pipeline_mode = #tpu.pipeline_mode<synchronous>, transform_indices = @transform_2, window_bounds = array<i64: 1, 64>}, {pipeline_mode = #tpu.pipeline_mode<synchronous>, transform_indices = @transform_3, window_bounds = array<i64: 64, 32>}, {pipeline_mode = #tpu.pipeline_mode<synchronous>, transform_indices = @transform_4, window_bounds = array<i64: 1, 32>}, {transform_indices = @transform_5, window_bounds = array<i64: 1, 1, 32>}]} {
    %c0 = arith.constant 0 : index
    %c0_0 = arith.constant 0 : index
    %c0_1 = arith.constant 0 : index
    %c0_2 = arith.constant 0 : index
    %0 = vector.load %arg1[%c0, %c0_0, %c0_1, %c0_2] : memref<1x15x15x4xf32, #tpu.memory_space<vmem>>, vector<1x15x15x4xf32>
    %1 = vector.shape_cast %0 : vector<1x15x15x4xf32> to vector<15x15x4xf32>
    %c0_3 = arith.constant 0 : index
    %c0_4 = arith.constant 0 : index
    %2 = vector.load %arg2[%c0_3, %c0_4] : memref<4x64xf32, #tpu.memory_space<vmem>>, vector<4x64xf32>
    %cst = arith.constant 0.000000e+00 : f32
    %3 = vector.broadcast %cst : f32 to vector<15x15x64xf32>
    %4 = vector.extract_strided_slice %1 {offsets = [0, 0, 0], sizes = [15, 15, 1], strides = [1, 1, 1]} : vector<15x15x4xf32> to vector<15x15x1xf32>
    %5 = vector.extract_strided_slice %2 {offsets = [0, 0], sizes = [1, 64], strides = [1, 1]} : vector<4x64xf32> to vector<1x64xf32>
    %6 = vector.shape_cast %5 : vector<1x64xf32> to vector<1x1x64xf32>
    %7 = vector.broadcast %4 : vector<15x15x1xf32> to vector<15x15x64xf32>
    %8 = vector.broadcast %6 : vector<1x1x64xf32> to vector<15x15x64xf32>
    %9 = arith.mulf %7, %8 : vector<15x15x64xf32>
    %10 = arith.addf %3, %9 : vector<15x15x64xf32>
    %11 = vector.extract_strided_slice %1 {offsets = [0, 0, 1], sizes = [15, 15, 1], strides = [1, 1, 1]} : vector<15x15x4xf32> to vector<15x15x1xf32>
    %12 = vector.extract_strided_slice %2 {offsets = [1, 0], sizes = [1, 64], strides = [1, 1]} : vector<4x64xf32> to vector<1x64xf32>
    %13 = vector.shape_cast %12 : vector<1x64xf32> to vector<1x1x64xf32>
    %14 = vector.broadcast %11 : vector<15x15x1xf32> to vector<15x15x64xf32>
    %15 = vector.broadcast %13 : vector<1x1x64xf32> to vector<15x15x64xf32>
    %16 = arith.mulf %14, %15 : vector<15x15x64xf32>
    %17 = arith.addf %10, %16 : vector<15x15x64xf32>
    %18 = vector.extract_strided_slice %1 {offsets = [0, 0, 2], sizes = [15, 15, 1], strides = [1, 1, 1]} : vector<15x15x4xf32> to vector<15x15x1xf32>
    %19 = vector.extract_strided_slice %2 {offsets = [2, 0], sizes = [1, 64], strides = [1, 1]} : vector<4x64xf32> to vector<1x64xf32>
    %20 = vector.shape_cast %19 : vector<1x64xf32> to vector<1x1x64xf32>
    %21 = vector.broadcast %18 : vector<15x15x1xf32> to vector<15x15x64xf32>
    %22 = vector.broadcast %20 : vector<1x1x64xf32> to vector<15x15x64xf32>
    %23 = arith.mulf %21, %22 : vector<15x15x64xf32>
    %24 = arith.addf %17, %23 : vector<15x15x64xf32>
    %25 = vector.extract_strided_slice %1 {offsets = [0, 0, 3], sizes = [15, 15, 1], strides = [1, 1, 1]} : vector<15x15x4xf32> to vector<15x15x1xf32>
    %26 = vector.extract_strided_slice %2 {offsets = [3, 0], sizes = [1, 64], strides = [1, 1]} : vector<4x64xf32> to vector<1x64xf32>
    %27 = vector.shape_cast %26 : vector<1x64xf32> to vector<1x1x64xf32>
    %28 = vector.broadcast %25 : vector<15x15x1xf32> to vector<15x15x64xf32>
    %29 = vector.broadcast %27 : vector<1x1x64xf32> to vector<15x15x64xf32>
    %30 = arith.mulf %28, %29 : vector<15x15x64xf32>
    %31 = arith.addf %24, %30 : vector<15x15x64xf32>
    %c0_5 = arith.constant 0 : index
    %c0_6 = arith.constant 0 : index
    %32 = vector.load %arg3[%c0_5, %c0_6] : memref<1x64xf32, #tpu.memory_space<vmem>>, vector<1x64xf32>
    %33 = vector.shape_cast %32 : vector<1x64xf32> to vector<1x1x64xf32>
    %34 = vector.broadcast %33 : vector<1x1x64xf32> to vector<15x15x64xf32>
    %35 = arith.addf %31, %34 : vector<15x15x64xf32>
    %cst_7 = arith.constant 0.000000e+00 : f32
    %36 = vector.broadcast %cst_7 : f32 to vector<15x15x64xf32>
    %37 = arith.maximumf %35, %36 : vector<15x15x64xf32>
    %cst_8 = arith.constant 2.500000e+00 : f32
    %38 = vector.broadcast %cst_8 : f32 to vector<15x15x64xf32>
    %39 = math.powf %37, %38 : vector<15x15x64xf32>
    %40 = vector.extract_strided_slice %39 {offsets = [0, 0, 0], sizes = [15, 11, 64], strides = [1, 1, 1]} : vector<15x15x64xf32> to vector<15x11x64xf32>
    %41 = vector.extract_strided_slice %39 {offsets = [0, 1, 0], sizes = [15, 11, 64], strides = [1, 1, 1]} : vector<15x15x64xf32> to vector<15x11x64xf32>
    %42 = arith.addf %40, %41 : vector<15x11x64xf32>
    %43 = vector.extract_strided_slice %39 {offsets = [0, 2, 0], sizes = [15, 11, 64], strides = [1, 1, 1]} : vector<15x15x64xf32> to vector<15x11x64xf32>
    %44 = arith.addf %42, %43 : vector<15x11x64xf32>
    %45 = vector.extract_strided_slice %39 {offsets = [0, 3, 0], sizes = [15, 11, 64], strides = [1, 1, 1]} : vector<15x15x64xf32> to vector<15x11x64xf32>
    %46 = arith.addf %44, %45 : vector<15x11x64xf32>
    %47 = vector.extract_strided_slice %39 {offsets = [0, 4, 0], sizes = [15, 11, 64], strides = [1, 1, 1]} : vector<15x15x64xf32> to vector<15x11x64xf32>
    %48 = arith.addf %46, %47 : vector<15x11x64xf32>
    %49 = vector.extract_strided_slice %48 {offsets = [0, 0, 0], sizes = [11, 11, 64], strides = [1, 1, 1]} : vector<15x11x64xf32> to vector<11x11x64xf32>
    %50 = vector.extract_strided_slice %48 {offsets = [1, 0, 0], sizes = [11, 11, 64], strides = [1, 1, 1]} : vector<15x11x64xf32> to vector<11x11x64xf32>
    %51 = arith.addf %49, %50 : vector<11x11x64xf32>
    %52 = vector.extract_strided_slice %48 {offsets = [2, 0, 0], sizes = [11, 11, 64], strides = [1, 1, 1]} : vector<15x11x64xf32> to vector<11x11x64xf32>
    %53 = arith.addf %51, %52 : vector<11x11x64xf32>
    %54 = vector.extract_strided_slice %48 {offsets = [3, 0, 0], sizes = [11, 11, 64], strides = [1, 1, 1]} : vector<15x11x64xf32> to vector<11x11x64xf32>
    %55 = arith.addf %53, %54 : vector<11x11x64xf32>
    %56 = vector.extract_strided_slice %48 {offsets = [4, 0, 0], sizes = [11, 11, 64], strides = [1, 1, 1]} : vector<15x11x64xf32> to vector<11x11x64xf32>
    %57 = arith.addf %55, %56 : vector<11x11x64xf32>
    %cst_9 = arith.constant 4.000000e-01 : f32
    %58 = vector.broadcast %cst_9 : f32 to vector<11x11x64xf32>
    %59 = math.powf %57, %58 : vector<11x11x64xf32>
    %cst_10 = arith.constant 0.275945932 : f32
    %60 = vector.broadcast %cst_10 : f32 to vector<11x11x64xf32>
    %61 = arith.mulf %59, %60 : vector<11x11x64xf32>
    %cst_11 = arith.constant 5.000000e-01 : f32
    %62 = vector.broadcast %cst_11 : f32 to vector<11x11x64xf32>
    %63 = arith.mulf %62, %61 : vector<11x11x64xf32>
    %64 = vector.extract_strided_slice %37 {offsets = [2, 2, 0], sizes = [11, 11, 64], strides = [1, 1, 1]} : vector<15x15x64xf32> to vector<11x11x64xf32>
    %cst_12 = arith.constant 5.000000e-01 : f32
    %65 = vector.broadcast %cst_12 : f32 to vector<11x11x64xf32>
    %66 = arith.mulf %65, %64 : vector<11x11x64xf32>
    %67 = arith.addf %63, %66 : vector<11x11x64xf32>
    %cst_13 = arith.constant 9.99999993E-9 : f32
    %68 = vector.broadcast %cst_13 : f32 to vector<11x11x64xf32>
    %69 = arith.maximumf %67, %68 : vector<11x11x64xf32>
    %cst_14 = arith.constant 4.600000e+00 : f32
    %70 = vector.broadcast %cst_14 : f32 to vector<11x11x64xf32>
    %71 = math.powf %69, %70 : vector<11x11x64xf32>
    %cst_15 = arith.constant dense<0.000000e+00> : vector<11x64xf32>
    %72 = vector.multi_reduction <add>, %71, %cst_15 [0] : vector<11x11x64xf32> to vector<11x64xf32>
    %cst_16 = arith.constant dense<0.000000e+00> : vector<64xf32>
    %73 = vector.multi_reduction <add>, %72, %cst_16 [0] : vector<11x64xf32> to vector<64xf32>
    %74 = vector.shape_cast %73 : vector<64xf32> to vector<1x64xf32>
    %cst_17 = arith.constant 0.00826446246 : f32
    %75 = vector.broadcast %cst_17 : f32 to vector<1x64xf32>
    %76 = arith.mulf %74, %75 : vector<1x64xf32>
    %cst_18 = arith.constant 0.217391297 : f32
    %77 = vector.broadcast %cst_18 : f32 to vector<1x64xf32>
    %78 = math.powf %76, %77 : vector<1x64xf32>
    %79 = arith.mulf %78, %78 : vector<1x64xf32>
    %cst_19 = arith.constant dense<0.000000e+00> : vector<1xf32>
    %80 = vector.multi_reduction <add>, %79, %cst_19 [1] : vector<1x64xf32> to vector<1xf32>
    %81 = vector.shape_cast %80 : vector<1xf32> to vector<1x1xf32>
    %cst_20 = arith.constant 1.000000e-24 : f32
    %82 = vector.broadcast %cst_20 : f32 to vector<1x1xf32>
    %83 = arith.maximumf %81, %82 : vector<1x1xf32>
    %84 = math.rsqrt %83 : vector<1x1xf32>
    %85 = vector.broadcast %84 : vector<1x1xf32> to vector<1x64xf32>
    %86 = arith.mulf %78, %85 : vector<1x64xf32>
    %87 = arith.truncf %86 : vector<1x64xf32> to vector<1x64xbf16>
    %c0_21 = arith.constant 0 : index
    %c0_22 = arith.constant 0 : index
    %88 = vector.load %arg4[%c0_21, %c0_22] : memref<64x32xf32, #tpu.memory_space<vmem>>, vector<64x32xf32>
    %89 = arith.truncf %88 : vector<64x32xf32> to vector<64x32xbf16>
    %cst_23 = arith.constant dense<0.000000e+00> : vector<1x32xf32>
    %90 = tpu.matmul %87, %89, %cst_23 {dimension_numbers = #tpu.dot_dimension_numbers<[1], [0], [0], [1], [0, 0, 1, 1], [], []>} : vector<1x64xbf16>, vector<64x32xbf16>, vector<1x32xf32> -> vector<1x32xf32>
    %c0_24 = arith.constant 0 : index
    %c0_25 = arith.constant 0 : index
    %91 = vector.load %arg5[%c0_24, %c0_25] : memref<1x32xf32, #tpu.memory_space<vmem>>, vector<1x32xf32>
    %92 = arith.addf %90, %91 : vector<1x32xf32>
    %93 = arith.mulf %92, %92 : vector<1x32xf32>
    %cst_26 = arith.constant dense<0.000000e+00> : vector<1xf32>
    %94 = vector.multi_reduction <add>, %93, %cst_26 [1] : vector<1x32xf32> to vector<1xf32>
    %95 = vector.shape_cast %94 : vector<1xf32> to vector<1x1xf32>
    %cst_27 = arith.constant 1.000000e-24 : f32
    %96 = vector.broadcast %cst_27 : f32 to vector<1x1xf32>
    %97 = arith.maximumf %95, %96 : vector<1x1xf32>
    %98 = math.rsqrt %97 : vector<1x1xf32>
    %99 = vector.broadcast %98 : vector<1x1xf32> to vector<1x32xf32>
    %100 = arith.mulf %92, %99 : vector<1x32xf32>
    %101 = vector.shape_cast %100 : vector<1x32xf32> to vector<1x1x32xf32>
    %c0_28 = arith.constant 0 : index
    %c0_29 = arith.constant 0 : index
    %c0_30 = arith.constant 0 : index
    %102 = vector.load %arg6[%c0_28, %c0_29, %c0_30] : memref<1x1x32xf32, #tpu.memory_space<vmem>>, vector<1x1x32xf32>
    tpu.vector_store %arg6[%c0_28, %c0_29, %c0_30], %101 {strides = array<i32>} : memref<1x1x32xf32, #tpu.memory_space<vmem>>, vector<1x1x32xf32>,
    return
  }
  func.func @transform_0(%arg0: i32) -> (i32, i32, i32, i32) {
    %c0_i32 = arith.constant 0 : i32
    %c0_i32_0 = arith.constant 0 : i32
    %c0_i32_1 = arith.constant 0 : i32
    %c0_i32_2 = arith.constant 0 : i32
    return %arg0, %c0_i32, %c0_i32_0, %c0_i32_1 : i32, i32, i32, i32
  }
  func.func @transform_1(%arg0: i32) -> (i32, i32) {
    %c0_i32 = arith.constant 0 : i32
    %c0_i32_0 = arith.constant 0 : i32
    %c0_i32_1 = arith.constant 0 : i32
    return %c0_i32, %c0_i32_0 : i32, i32
  }
  func.func @transform_2(%arg0: i32) -> (i32, i32) {
    %c0_i32 = arith.constant 0 : i32
    %c0_i32_0 = arith.constant 0 : i32
    %c0_i32_1 = arith.constant 0 : i32
    return %c0_i32, %c0_i32_0 : i32, i32
  }
  func.func @transform_3(%arg0: i32) -> (i32, i32) {
    %c0_i32 = arith.constant 0 : i32
    %c0_i32_0 = arith.constant 0 : i32
    %c0_i32_1 = arith.constant 0 : i32
    return %c0_i32, %c0_i32_0 : i32, i32
  }
  func.func @transform_4(%arg0: i32) -> (i32, i32) {
    %c0_i32 = arith.constant 0 : i32
    %c0_i32_0 = arith.constant 0 : i32
    %c0_i32_1 = arith.constant 0 : i32
    return %c0_i32, %c0_i32_0 : i32, i32
  }
  func.func @transform_5(%arg0: i32) -> (i32, i32, i32) {
    %c0_i32 = arith.constant 0 : i32
    %c0_i32_0 = arith.constant 0 : i32
    %c0_i32_1 = arith.constant 0 : i32
    return %arg0, %c0_i32, %c0_i32_0 : i32, i32, i32
  }
}

</mosaic_0001>

<llo_original>
// kernel: tpu_custom_call.1
$region0: #{tpu_custom_call.1}
  #allocation0 [shape = 'u32[]', space=smem, size = 0x4, offset = 0x4, fixed_abs, tag = 'smem constant byte address 0x4 - core index']
  #allocation1 [shape = 'u32[144,128]{1,0:T(1,128)}', space=vmem, size = 0x12000, scoped, tag = 'internal scratch']
  %s0 = inlined_call_operand.vmem [shape: f32[2,15,15,4], index: 0, kind: input, shape index: {}]
  %s1 = inlined_call_operand.vmem [shape: f32[4,64], index: 1, kind: input, shape index: {}]
  %s2 = inlined_call_operand.vmem [shape: f32[1,64], index: 2, kind: input, shape index: {}]
  %s3 = inlined_call_operand.vmem [shape: f32[64,32], index: 3, kind: input, shape index: {}]
  %s4 = inlined_call_operand.vmem [shape: f32[1,32], index: 4, kind: input, shape index: {}]
  %s5 = inlined_call_operand.hbm [shape: f32[2,1,32], index: 5, kind: output, shape index: {}]
  %s6 = sld [smem:[#allocation0]]
  $region53: #{tpu_custom_call.1} parent=0
    _
  %s8 = ssub.s32 1, %s6
  %s9 = scalar_select 0, %s8, %s6
  $region1: #{tpu_custom_call.1} parent=0
    #allocation2 [shape = 'u8[1024]{0}', space=vmem, size = 0x400, scoped, tag = 'output window, operand 0']
    #allocation3 [shape = 's32[2]{0}', space=sflag, size = 0x8, scoped, tag = 'scoped memory for tpu_custom_call.1']
    %10 = vsyncpa [#allocation3], 0
    %s11 = scalar_lea.sflag [#allocation3], 1
    %12 = vsyncpa %s11, 0
    loop: start=0, step=1, limit=4
    $region2: #{tpu_custom_call.1} parent=1 // loop_pre_header
      _
    $region3: #{tpu_custom_call.1} parent=1 // loop_header
      %s14 = sphi 0, %s18
      %p15 = scmp.ge.s32.totalorder %s14, 4
      %s24 = sphi 0, %s26
      %s27 = sphi 0, %s24
      %s28 = sphi 0, %s27
      %s44 = sphi 0, %s28
      %s48 = sphi 0, %s48
      %s50 = sphi 0, %s48
      %s51 = sphi 0, %s50
      %s65 = sphi 0, %s51
      %s69 = sphi 0, %s69
      %s71 = sphi 0, %s69
      %s72 = sphi 0, %s71
      %s86 = sphi 0, %s72
      %s90 = sphi 0, %s90
      %s92 = sphi 0, %s90
      %s93 = sphi 0, %s92
      %s107 = sphi 0, %s93
      %s111 = sphi 0, %s111
      %s113 = sphi 0, %s111
      %s114 = sphi 0, %s113
      %s128 = sphi 0, %s114
      %s134 = sphi 0, %s136
      %s137 = sphi 0, %s134
      %s138 = sphi 0, %s137
      %s154 = sphi 0, %s138
    $region4: #{tpu_custom_call.1} parent=1 // loop_header_branch
      %17 = sbr.rel (%p15) target = $region8
    $region5: #{tpu_custom_call.1} parent=1 // loop_body
      %s19 = ssub.s32 %s14, 1
      %s20 = ssub.s32 %s14, 2
      %s21 = sadd.s32 %s14, 1
      %s22 = ssub.s32 %s14, %s21
      %p23 = scmp.eq.s32.totalorder %s22, 0
      %s25 = sadd.s32 %s24, 1
      %s26 = scalar_select %p23, %s24, %s25
      %p29 = pneg %p23
      %p30 = scmp.eq.s32.totalorder %s14, 1
      %p31 = por %p29, %p30
      %p32 = scmp.ne.s32.totalorder %s24, %s27
      %p33 = scmp.eq.s32.totalorder %s14, 0
      %p34 = por %p32, %p33
      %p35 = scmp.ne.s32.totalorder %s24, %s27
      %p36 = scmp.eq.s32.totalorder %s19, 1
      %p37 = por %p35, %p36
      %p38 = scmp.ne.s32.totalorder %s27, %s28
      %p39 = scmp.eq.s32.totalorder %s19, 0
      %p40 = por %p38, %p39
      %p41 = scmp.ne.s32.totalorder %s27, %s28
      %p42 = scmp.eq.s32.totalorder %s20, 1
      %p43 = por %p41, %p42
      %p45 = scmp.ne.s32.totalorder %s28, %s44
      %p46 = scmp.eq.s32.totalorder %s20, 0
      %p47 = por %p45, %p46
      %s49 = sadd.s32 %s48, 1
      %p52 = scmp.eq.s32.totalorder %s14, 1
      %p53 = scmp.ne.s32.totalorder %s48, %s50
      %p54 = scmp.eq.s32.totalorder %s14, 0
      %p55 = por %p53, %p54
      %p56 = scmp.ne.s32.totalorder %s48, %s50
      %p57 = scmp.eq.s32.totalorder %s19, 1
      %p58 = por %p56, %p57
      %p59 = scmp.ne.s32.totalorder %s50, %s51
      %p60 = scmp.eq.s32.totalorder %s19, 0
      %p61 = por %p59, %p60
      %p62 = scmp.ne.s32.totalorder %s50, %s51
      %p63 = scmp.eq.s32.totalorder %s20, 1
      %p64 = por %p62, %p63
      %p66 = scmp.ne.s32.totalorder %s51, %s65
      %p67 = scmp.eq.s32.totalorder %s20, 0
      %p68 = por %p66, %p67
      %s70 = sadd.s32 %s69, 1
      %p73 = scmp.eq.s32.totalorder %s14, 1
      %p74 = scmp.ne.s32.totalorder %s69, %s71
      %p75 = scmp.eq.s32.totalorder %s14, 0
      %p76 = por %p74, %p75
      %p77 = scmp.ne.s32.totalorder %s69, %s71
      %p78 = scmp.eq.s32.totalorder %s19, 1
      %p79 = por %p77, %p78
      %p80 = scmp.ne.s32.totalorder %s71, %s72
      %p81 = scmp.eq.s32.totalorder %s19, 0
      %p82 = por %p80, %p81
      %p83 = scmp.ne.s32.totalorder %s71, %s72
      %p84 = scmp.eq.s32.totalorder %s20, 1
      %p85 = por %p83, %p84
      %p87 = scmp.ne.s32.totalorder %s72, %s86
      %p88 = scmp.eq.s32.totalorder %s20, 0
      %p89 = por %p87, %p88
      %s91 = sadd.s32 %s90, 1
      %p94 = scmp.eq.s32.totalorder %s14, 1
      %p95 = scmp.ne.s32.totalorder %s90, %s92
      %p96 = scmp.eq.s32.totalorder %s14, 0
      %p97 = por %p95, %p96
      %p98 = scmp.ne.s32.totalorder %s90, %s92
      %p99 = scmp.eq.s32.totalorder %s19, 1
      %p100 = por %p98, %p99
      %p101 = scmp.ne.s32.totalorder %s92, %s93
      %p102 = scmp.eq.s32.totalorder %s19, 0
      %p103 = por %p101, %p102
      %p104 = scmp.ne.s32.totalorder %s92, %s93
      %p105 = scmp.eq.s32.totalorder %s20, 1
      %p106 = por %p104, %p105
      %p108 = scmp.ne.s32.totalorder %s93, %s107
      %p109 = scmp.eq.s32.totalorder %s20, 0
      %p110 = por %p108, %p109
      %s112 = sadd.s32 %s111, 1
      %p115 = scmp.eq.s32.totalorder %s14, 1
      %p116 = scmp.ne.s32.totalorder %s111, %s113
      %p117 = scmp.eq.s32.totalorder %s14, 0
      %p118 = por %p116, %p117
      %p119 = scmp.ne.s32.totalorder %s111, %s113
      %p120 = scmp.eq.s32.totalorder %s19, 1
      %p121 = por %p119, %p120
      %p122 = scmp.ne.s32.totalorder %s113, %s114
      %p123 = scmp.eq.s32.totalorder %s19, 0
      %p124 = por %p122, %p123
      %p125 = scmp.ne.s32.totalorder %s113, %s114
      %p126 = scmp.eq.s32.totalorder %s20, 1
      %p127 = por %p125, %p126
      %p129 = scmp.ne.s32.totalorder %s114, %s128
      %p130 = scmp.eq.s32.totalorder %s20, 0
      %p131 = por %p129, %p130
      %s132 = ssub.s32 %s14, %s21
      %p133 = scmp.eq.s32.totalorder %s132, 0
      %s135 = sadd.s32 %s134, 1
      %s136 = scalar_select %p133, %s134, %s135
      %p139 = pneg %p133
      %p140 = scmp.eq.s32.totalorder %s14, 1
      %p141 = por %p139, %p140
      %p142 = scmp.ne.s32.totalorder %s134, %s137
      %p143 = scmp.eq.s32.totalorder %s14, 0
      %p144 = por %p142, %p143
      %p145 = scmp.ne.s32.totalorder %s134, %s137
      %p146 = scmp.eq.s32.totalorder %s19, 1
      %p147 = por %p145, %p146
      %p148 = scmp.ne.s32.totalorder %s137, %s138
      %p149 = scmp.eq.s32.totalorder %s19, 0
      %p150 = por %p148, %p149
      %p151 = scmp.ne.s32.totalorder %s137, %s138
      %p152 = scmp.eq.s32.totalorder %s20, 1
      %p153 = por %p151, %p152
      %p155 = scmp.ne.s32.totalorder %s138, %s154
      %p156 = scmp.eq.s32.totalorder %s20, 0
      %p157 = por %p155, %p156
      %p158 = scmp.le.s32.totalorder 1, %s14
      %p159 = scmp.lt.s32.totalorder %s14, 3
      %p160 = pnand %p158, %p159
      %p161 = pneg %p160
      // Predicated region
      $region9: #{tpu_custom_call.1} parent=5 // pred_check
        _
      $region10: #{tpu_custom_call.1} parent=5 // pred_check_branch
        %163 = sbr.rel (%p160) target = $region12
      $region11: #{tpu_custom_call.1} parent=5 // pred_region
        %s164 = ssub.s32 %s14, 1
        // Predicated region
        $region13: #{tpu_custom_call.1} parent=11 // pred_check
          %p165 = pneg %p61
        $region14: #{tpu_custom_call.1} parent=11 // pred_check_branch
          %167 = sbr.rel (%p165) target = $region16
        $region15: #{tpu_custom_call.1} parent=11 // pred_region
          _
        $region16: #{tpu_custom_call.1} parent=11 // pred_fallthru
          _
        // Predicated region
        $region17: #{tpu_custom_call.1} parent=11 // pred_check
          %p168 = pneg %p82
        $region18: #{tpu_custom_call.1} parent=11 // pred_check_branch
          %170 = sbr.rel (%p168) target = $region20
        $region19: #{tpu_custom_call.1} parent=11 // pred_region
          _
        $region20: #{tpu_custom_call.1} parent=11 // pred_fallthru
          _
        // Predicated region
        $region21: #{tpu_custom_call.1} parent=11 // pred_check
          %p171 = pneg %p103
        $region22: #{tpu_custom_call.1} parent=11 // pred_check_branch
          %173 = sbr.rel (%p171) target = $region24
        $region23: #{tpu_custom_call.1} parent=11 // pred_region
          _
        $region24: #{tpu_custom_call.1} parent=11 // pred_fallthru
          _
        // Predicated region
        $region25: #{tpu_custom_call.1} parent=11 // pred_check
          %p174 = pneg %p124
        $region26: #{tpu_custom_call.1} parent=11 // pred_check_branch
          %176 = sbr.rel (%p174) target = $region28
        $region27: #{tpu_custom_call.1} parent=11 // pred_region
          _
        $region28: #{tpu_custom_call.1} parent=11 // pred_fallthru
          _
      $region12: #{tpu_custom_call.1} parent=5 // pred_fallthru
        _
      %p177 = scmp.lt.s32.totalorder %s14, 2
      // Predicated region
      $region29: #{tpu_custom_call.1} parent=5 // pred_check
        %p178 = pneg %p177
      $region30: #{tpu_custom_call.1} parent=5 // pred_check_branch
        %180 = sbr.rel (%p178) target = $region32
      $region31: #{tpu_custom_call.1} parent=5 // pred_region
        // Predicated region
        $region33: #{tpu_custom_call.1} parent=31 // pred_check
          %p181 = pneg %p34
        $region34: #{tpu_custom_call.1} parent=31 // pred_check_branch
          %183 = sbr.rel (%p181) target = $region36
        $region35: #{tpu_custom_call.1} parent=31 // pred_region
          %p184 = scmp.lt.s32.totalorder %s14, 1
          %s185 = scalar_select %p184, %s14, 1
          %s186 = smul.addr %s185, 30
          %s187 = smul.addr %s186, 8
          %s188 = scalar_lea.vmem %s0, %s187
        $region36: #{tpu_custom_call.1} parent=31 // pred_fallthru
          _
      $region32: #{tpu_custom_call.1} parent=5 // pred_fallthru
        _
      %p189 = scmp.le.s32.totalorder 1, %s14
      %p190 = scmp.lt.s32.totalorder %s14, 3
      %p191 = pnand %p189, %p190
      %p192 = pneg %p191
      // Predicated region
      $region37: #{tpu_custom_call.1} parent=5 // pred_check
        _
      $region38: #{tpu_custom_call.1} parent=5 // pred_check_branch
        %194 = sbr.rel (%p191) target = $region40
      $region39: #{tpu_custom_call.1} parent=5 // pred_region
        %s195 = ssub.s32 %s14, 1
        %p196 = scmp.lt.s32.totalorder %s19, 1
        %s197 = scalar_select %p196, %s19, 1
        %s198 = smul.addr %s197, 30
        %s199 = smul.addr %s198, 8
        %s200 = scalar_lea.vmem %s0, %s199
        %p201 = pneg %p40
        %p202 = pneg %p37
        %p203 = pneg %p61
        %p204 = pneg %p58
        %p205 = pneg %p82
        %p206 = pneg %p79
        %p207 = pneg %p103
        %p208 = pneg %p100
        %p209 = pneg %p124
        %p210 = pneg %p121
        %p211 = pneg %p150
        %p212 = pneg %p147
        %s213 = sand.u32 %s137, 1
        %s214 = scalar_lea.sflag [#allocation3], %s213
        %s215 = sand.u32 %s137, 1
        %s216 = scalar_lea.vmem [#allocation2], %s215
        %p217 = scmp.lt.s32.totalorder %s19, 1
        %s218 = scalar_select %p217, %s19, 1
        %s219 = smul.addr %s218, 30
        %s220 = smul.addr %s219, 8
        %s221 = scalar_lea.vmem %s0, %s220
        %v223 = vld [vmem:[%s221] sm:$0xff]
        %v224 = vld [vmem:[%s221 + $0x8] sm:$0x7f]
        %v225 = vld [vmem:[%s221 + $0x10] sm:$0xff]
        %v226 = vld [vmem:[%s221 + $0x18] sm:$0x7f]
        %v227 = vld [vmem:[%s221 + $0x20] sm:$0xff]
        %v228 = vld [vmem:[%s221 + $0x28] sm:$0x7f]
        %v229 = vld [vmem:[%s221 + $0x30] sm:$0xff]
        %v230 = vld [vmem:[%s221 + $0x38] sm:$0x7f]
        %v231 = vld [vmem:[%s221 + $0x40] sm:$0xff]
        %v232 = vld [vmem:[%s221 + $0x48] sm:$0x7f]
        %v233 = vld [vmem:[%s221 + $0x50] sm:$0xff]
        %v234 = vld [vmem:[%s221 + $0x58] sm:$0x7f]
        %v235 = vld [vmem:[%s221 + $0x60] sm:$0xff]
        %v236 = vld [vmem:[%s221 + $0x68] sm:$0x7f]
        %v237 = vld [vmem:[%s221 + $0x70] sm:$0xff]
        %v238 = vld [vmem:[%s221 + $0x78] sm:$0x7f]
        %v239 = vld [vmem:[%s221 + $0x80] sm:$0xff]
        %v240 = vld [vmem:[%s221 + $0x88] sm:$0x7f]
        %v241 = vld [vmem:[%s221 + $0x90] sm:$0xff]
        %v242 = vld [vmem:[%s221 + $0x98] sm:$0x7f]
        %v243 = vld [vmem:[%s221 + $0xa0] sm:$0xff]
        %v244 = vld [vmem:[%s221 + $0xa8] sm:$0x7f]
        %v245 = vld [vmem:[%s221 + $0xb0] sm:$0xff]
        %v246 = vld [vmem:[%s221 + $0xb8] sm:$0x7f]
        %v247 = vld [vmem:[%s221 + $0xc0] sm:$0xff]
        %v248 = vld [vmem:[%s221 + $0xc8] sm:$0x7f]
        %v249 = vld [vmem:[%s221 + $0xd0] sm:$0xff]
        %v250 = vld [vmem:[%s221 + $0xd8] sm:$0x7f]
        %v251 = vld [vmem:[%s221 + $0xe0] sm:$0xff]
        %v252 = vld [vmem:[%s221 + $0xe8] sm:$0x7f]
        %v253 = vld [vmem:[%s1] sm:$0xf]
        %255 = vset.pattern.permute.xlu0 0
        %256 = vperm.xlu0 %255, %v223
        %v257 = vpop.permute.xlu0 %256
        %260 = vset.pattern.permute.xlu0 0
        %261 = vperm.xlu0 %260, %v224
        %v262 = vpop.permute.xlu0 %261
        %265 = vset.pattern.permute.xlu0 0
        %266 = vperm.xlu0 %265, %v225
        %v267 = vpop.permute.xlu0 %266
        %270 = vset.pattern.permute.xlu0 0
        %271 = vperm.xlu0 %270, %v226
        %v272 = vpop.permute.xlu0 %271
        %275 = vset.pattern.permute.xlu0 0
        %276 = vperm.xlu0 %275, %v227
        %v277 = vpop.permute.xlu0 %276
        %280 = vset.pattern.permute.xlu0 0
        %281 = vperm.xlu0 %280, %v228
        %v282 = vpop.permute.xlu0 %281
        %285 = vset.pattern.permute.xlu0 0
        %286 = vperm.xlu0 %285, %v229
        %v287 = vpop.permute.xlu0 %286
        %290 = vset.pattern.permute.xlu0 0
        %291 = vperm.xlu0 %290, %v230
        %v292 = vpop.permute.xlu0 %291
        %295 = vset.pattern.permute.xlu0 0
        %296 = vperm.xlu0 %295, %v231
        %v297 = vpop.permute.xlu0 %296
        %300 = vset.pattern.permute.xlu0 0
        %301 = vperm.xlu0 %300, %v232
        %v302 = vpop.permute.xlu0 %301
        %305 = vset.pattern.permute.xlu0 0
        %306 = vperm.xlu0 %305, %v233
        %v307 = vpop.permute.xlu0 %306
        %310 = vset.pattern.permute.xlu0 0
        %311 = vperm.xlu0 %310, %v234
        %v312 = vpop.permute.xlu0 %311
        %315 = vset.pattern.permute.xlu0 0
        %316 = vperm.xlu0 %315, %v235
        %v317 = vpop.permute.xlu0 %316
        %320 = vset.pattern.permute.xlu0 0
        %321 = vperm.xlu0 %320, %v236
        %v322 = vpop.permute.xlu0 %321
        %325 = vset.pattern.permute.xlu0 0
        %326 = vperm.xlu0 %325, %v237
        %v327 = vpop.permute.xlu0 %326
        %330 = vset.pattern.permute.xlu0 0
        %331 = vperm.xlu0 %330, %v238
        %v332 = vpop.permute.xlu0 %331
        %335 = vset.pattern.permute.xlu0 0
        %336 = vperm.xlu0 %335, %v239
        %v337 = vpop.permute.xlu0 %336
        %340 = vset.pattern.permute.xlu0 0
        %341 = vperm.xlu0 %340, %v240
        %v342 = vpop.permute.xlu0 %341
        %345 = vset.pattern.permute.xlu0 0
        %346 = vperm.xlu0 %345, %v241
        %v347 = vpop.permute.xlu0 %346
        %350 = vset.pattern.permute.xlu0 0
        %351 = vperm.xlu0 %350, %v242
        %v352 = vpop.permute.xlu0 %351
        %355 = vset.pattern.permute.xlu0 0
        %356 = vperm.xlu0 %355, %v243
        %v357 = vpop.permute.xlu0 %356
        %360 = vset.pattern.permute.xlu0 0
        %361 = vperm.xlu0 %360, %v244
        %v362 = vpop.permute.xlu0 %361
        %365 = vset.pattern.permute.xlu0 0
        %366 = vperm.xlu0 %365, %v245
        %v367 = vpop.permute.xlu0 %366
        %370 = vset.pattern.permute.xlu0 0
        %371 = vperm.xlu0 %370, %v246
        %v372 = vpop.permute.xlu0 %371
        %375 = vset.pattern.permute.xlu0 0
        %376 = vperm.xlu0 %375, %v247
        %v377 = vpop.permute.xlu0 %376
        %380 = vset.pattern.permute.xlu0 0
        %381 = vperm.xlu0 %380, %v248
        %v382 = vpop.permute.xlu0 %381
        %385 = vset.pattern.permute.xlu0 0
        %386 = vperm.xlu0 %385, %v249
        %v387 = vpop.permute.xlu0 %386
        %390 = vset.pattern.permute.xlu0 0
        %391 = vperm.xlu0 %390, %v250
        %v392 = vpop.permute.xlu0 %391
        %395 = vset.pattern.permute.xlu0 0
        %396 = vperm.xlu0 %395, %v251
        %v397 = vpop.permute.xlu0 %396
        %400 = vset.pattern.permute.xlu0 0
        %401 = vperm.xlu0 %400, %v252
        %v402 = vpop.permute.xlu0 %401
        %v404 = vlaneseq
        %v405 = vshrl.u32 %v404, 7
        %v406 = vsub.s32 0, %v405
        %v407 = vrot.slane %v253, %v406
        %v408 = vmul.f32 %v257, %v407
        %v409 = vmul.f32 %v262, %v407
        %v410 = vmul.f32 %v267, %v407
        %v411 = vmul.f32 %v272, %v407
        %v412 = vmul.f32 %v277, %v407
        %v413 = vmul.f32 %v282, %v407
        %v414 = vmul.f32 %v287, %v407
        %v415 = vmul.f32 %v292, %v407
        %v416 = vmul.f32 %v297, %v407
        %v417 = vmul.f32 %v302, %v407
        %v418 = vmul.f32 %v307, %v407
        %v419 = vmul.f32 %v312, %v407
        %v420 = vmul.f32 %v317, %v407
        %v421 = vmul.f32 %v322, %v407
        %v422 = vmul.f32 %v327, %v407
        %v423 = vmul.f32 %v332, %v407
        %v424 = vmul.f32 %v337, %v407
        %v425 = vmul.f32 %v342, %v407
        %v426 = vmul.f32 %v347, %v407
        %v427 = vmul.f32 %v352, %v407
        %v428 = vmul.f32 %v357, %v407
        %v429 = vmul.f32 %v362, %v407
        %v430 = vmul.f32 %v367, %v407
        %v431 = vmul.f32 %v372, %v407
        %v432 = vmul.f32 %v377, %v407
        %v433 = vmul.f32 %v382, %v407
        %v434 = vmul.f32 %v387, %v407
        %v435 = vmul.f32 %v392, %v407
        %v436 = vmul.f32 %v397, %v407
        %v437 = vmul.f32 %v402, %v407
        %v438 = vadd.f32 %v408, 0.0
        %v439 = vadd.f32 %v409, 0.0
        %v440 = vadd.f32 %v410, 0.0
        %v441 = vadd.f32 %v411, 0.0
        %v442 = vadd.f32 %v412, 0.0
        %v443 = vadd.f32 %v413, 0.0
        %v444 = vadd.f32 %v414, 0.0
        %v445 = vadd.f32 %v415, 0.0
        %v446 = vadd.f32 %v416, 0.0
        %v447 = vadd.f32 %v417, 0.0
        %v448 = vadd.f32 %v418, 0.0
        %v449 = vadd.f32 %v419, 0.0
        %v450 = vadd.f32 %v420, 0.0
        %v451 = vadd.f32 %v421, 0.0
        %v452 = vadd.f32 %v422, 0.0
        %v453 = vadd.f32 %v423, 0.0
        %v454 = vadd.f32 %v424, 0.0
        %v455 = vadd.f32 %v425, 0.0
        %v456 = vadd.f32 %v426, 0.0
        %v457 = vadd.f32 %v427, 0.0
        %v458 = vadd.f32 %v428, 0.0
        %v459 = vadd.f32 %v429, 0.0
        %v460 = vadd.f32 %v430, 0.0
        %v461 = vadd.f32 %v431, 0.0
        %v462 = vadd.f32 %v432, 0.0
        %v463 = vadd.f32 %v433, 0.0
        %v464 = vadd.f32 %v434, 0.0
        %v465 = vadd.f32 %v435, 0.0
        %v466 = vadd.f32 %v436, 0.0
        %v467 = vadd.f32 %v437, 0.0
        %468 = vset.pattern.permute.xlu0 1
        %469 = vperm.xlu0 %468, %v223
        %v470 = vpop.permute.xlu0 %469
        %472 = vset.pattern.permute.xlu0 1
        %473 = vperm.xlu0 %472, %v224
        %v474 = vpop.permute.xlu0 %473
        %476 = vset.pattern.permute.xlu0 1
        %477 = vperm.xlu0 %476, %v225
        %v478 = vpop.permute.xlu0 %477
        %480 = vset.pattern.permute.xlu0 1
        %481 = vperm.xlu0 %480, %v226
        %v482 = vpop.permute.xlu0 %481
        %484 = vset.pattern.permute.xlu0 1
        %485 = vperm.xlu0 %484, %v227
        %v486 = vpop.permute.xlu0 %485
        %488 = vset.pattern.permute.xlu0 1
        %489 = vperm.xlu0 %488, %v228
        %v490 = vpop.permute.xlu0 %489
        %492 = vset.pattern.permute.xlu0 1
        %493 = vperm.xlu0 %492, %v229
        %v494 = vpop.permute.xlu0 %493
        %496 = vset.pattern.permute.xlu0 1
        %497 = vperm.xlu0 %496, %v230
        %v498 = vpop.permute.xlu0 %497
        %500 = vset.pattern.permute.xlu0 1
        %501 = vperm.xlu0 %500, %v231
        %v502 = vpop.permute.xlu0 %501
        %504 = vset.pattern.permute.xlu0 1
        %505 = vperm.xlu0 %504, %v232
        %v506 = vpop.permute.xlu0 %505
        %508 = vset.pattern.permute.xlu0 1
        %509 = vperm.xlu0 %508, %v233
        %v510 = vpop.permute.xlu0 %509
        %512 = vset.pattern.permute.xlu0 1
        %513 = vperm.xlu0 %512, %v234
        %v514 = vpop.permute.xlu0 %513
        %516 = vset.pattern.permute.xlu0 1
        %517 = vperm.xlu0 %516, %v235
        %v518 = vpop.permute.xlu0 %517
        %520 = vset.pattern.permute.xlu0 1
        %521 = vperm.xlu0 %520, %v236
        %v522 = vpop.permute.xlu0 %521
        %524 = vset.pattern.permute.xlu0 1
        %525 = vperm.xlu0 %524, %v237
        %v526 = vpop.permute.xlu0 %525
        %528 = vset.pattern.permute.xlu0 1
        %529 = vperm.xlu0 %528, %v238
        %v530 = vpop.permute.xlu0 %529
        %532 = vset.pattern.permute.xlu0 1
        %533 = vperm.xlu0 %532, %v239
        %v534 = vpop.permute.xlu0 %533
        %536 = vset.pattern.permute.xlu0 1
        %537 = vperm.xlu0 %536, %v240
        %v538 = vpop.permute.xlu0 %537
        %540 = vset.pattern.permute.xlu0 1
        %541 = vperm.xlu0 %540, %v241
        %v542 = vpop.permute.xlu0 %541
        %544 = vset.pattern.permute.xlu0 1
        %545 = vperm.xlu0 %544, %v242
        %v546 = vpop.permute.xlu0 %545
        %548 = vset.pattern.permute.xlu0 1
        %549 = vperm.xlu0 %548, %v243
        %v550 = vpop.permute.xlu0 %549
        %552 = vset.pattern.permute.xlu0 1
        %553 = vperm.xlu0 %552, %v244
        %v554 = vpop.permute.xlu0 %553
        %556 = vset.pattern.permute.xlu0 1
        %557 = vperm.xlu0 %556, %v245
        %v558 = vpop.permute.xlu0 %557
        %560 = vset.pattern.permute.xlu0 1
        %561 = vperm.xlu0 %560, %v246
        %v562 = vpop.permute.xlu0 %561
        %564 = vset.pattern.permute.xlu0 1
        %565 = vperm.xlu0 %564, %v247
        %v566 = vpop.permute.xlu0 %565
        %568 = vset.pattern.permute.xlu0 1
        %569 = vperm.xlu0 %568, %v248
        %v570 = vpop.permute.xlu0 %569
        %572 = vset.pattern.permute.xlu0 1
        %573 = vperm.xlu0 %572, %v249
        %v574 = vpop.permute.xlu0 %573
        %576 = vset.pattern.permute.xlu0 1
        %577 = vperm.xlu0 %576, %v250
        %v578 = vpop.permute.xlu0 %577
        %580 = vset.pattern.permute.xlu0 1
        %581 = vperm.xlu0 %580, %v251
        %v582 = vpop.permute.xlu0 %581
        %584 = vset.pattern.permute.xlu0 1
        %585 = vperm.xlu0 %584, %v252
        %v586 = vpop.permute.xlu0 %585
        %v588 = vlaneseq
        %v589 = vshrl.u32 %v588, 7
        %v590 = vsub.s32 1, %v589
        %v591 = vrot.slane %v253, %v590
        %v592 = vmul.f32 %v470, %v591
        %v593 = vmul.f32 %v474, %v591
        %v594 = vmul.f32 %v478, %v591
        %v595 = vmul.f32 %v482, %v591
        %v596 = vmul.f32 %v486, %v591
        %v597 = vmul.f32 %v490, %v591
        %v598 = vmul.f32 %v494, %v591
        %v599 = vmul.f32 %v498, %v591
        %v600 = vmul.f32 %v502, %v591
        %v601 = vmul.f32 %v506, %v591
        %v602 = vmul.f32 %v510, %v591
        %v603 = vmul.f32 %v514, %v591
        %v604 = vmul.f32 %v518, %v591
        %v605 = vmul.f32 %v522, %v591
        %v606 = vmul.f32 %v526, %v591
        %v607 = vmul.f32 %v530, %v591
        %v608 = vmul.f32 %v534, %v591
        %v609 = vmul.f32 %v538, %v591
        %v610 = vmul.f32 %v542, %v591
        %v611 = vmul.f32 %v546, %v591
        %v612 = vmul.f32 %v550, %v591
        %v613 = vmul.f32 %v554, %v591
        %v614 = vmul.f32 %v558, %v591
        %v615 = vmul.f32 %v562, %v591
        %v616 = vmul.f32 %v566, %v591
        %v617 = vmul.f32 %v570, %v591
        %v618 = vmul.f32 %v574, %v591
        %v619 = vmul.f32 %v578, %v591
        %v620 = vmul.f32 %v582, %v591
        %v621 = vmul.f32 %v586, %v591
        %v622 = vadd.f32 %v438, %v592
        %v623 = vadd.f32 %v439, %v593
        %v624 = vadd.f32 %v440, %v594
        %v625 = vadd.f32 %v441, %v595
        %v626 = vadd.f32 %v442, %v596
        %v627 = vadd.f32 %v443, %v597
        %v628 = vadd.f32 %v444, %v598
        %v629 = vadd.f32 %v445, %v599
        %v630 = vadd.f32 %v446, %v600
        %v631 = vadd.f32 %v447, %v601
        %v632 = vadd.f32 %v448, %v602
        %v633 = vadd.f32 %v449, %v603
        %v634 = vadd.f32 %v450, %v604
        %v635 = vadd.f32 %v451, %v605
        %v636 = vadd.f32 %v452, %v606
        %v637 = vadd.f32 %v453, %v607
        %v638 = vadd.f32 %v454, %v608
        %v639 = vadd.f32 %v455, %v609
        %v640 = vadd.f32 %v456, %v610
        %v641 = vadd.f32 %v457, %v611
        %v642 = vadd.f32 %v458, %v612
        %v643 = vadd.f32 %v459, %v613
        %v644 = vadd.f32 %v460, %v614
        %v645 = vadd.f32 %v461, %v615
        %v646 = vadd.f32 %v462, %v616
        %v647 = vadd.f32 %v463, %v617
        %v648 = vadd.f32 %v464, %v618
        %v649 = vadd.f32 %v465, %v619
        %v650 = vadd.f32 %v466, %v620
        %v651 = vadd.f32 %v467, %v621
        %652 = vset.pattern.permute.xlu0 2
        %653 = vperm.xlu0 %652, %v223
        %v654 = vpop.permute.xlu0 %653
        %656 = vset.pattern.permute.xlu0 2
        %657 = vperm.xlu0 %656, %v224
        %v658 = vpop.permute.xlu0 %657
        %660 = vset.pattern.permute.xlu0 2
        %661 = vperm.xlu0 %660, %v225
        %v662 = vpop.permute.xlu0 %661
        %664 = vset.pattern.permute.xlu0 2
        %665 = vperm.xlu0 %664, %v226
        %v666 = vpop.permute.xlu0 %665
        %668 = vset.pattern.permute.xlu0 2
        %669 = vperm.xlu0 %668, %v227
        %v670 = vpop.permute.xlu0 %669
        %672 = vset.pattern.permute.xlu0 2
        %673 = vperm.xlu0 %672, %v228
        %v674 = vpop.permute.xlu0 %673
        %676 = vset.pattern.permute.xlu0 2
        %677 = vperm.xlu0 %676, %v229
        %v678 = vpop.permute.xlu0 %677
        %680 = vset.pattern.permute.xlu0 2
        %681 = vperm.xlu0 %680, %v230
        %v682 = vpop.permute.xlu0 %681
        %684 = vset.pattern.permute.xlu0 2
        %685 = vperm.xlu0 %684, %v231
        %v686 = vpop.permute.xlu0 %685
        %688 = vset.pattern.permute.xlu0 2
        %689 = vperm.xlu0 %688, %v232
        %v690 = vpop.permute.xlu0 %689
        %692 = vset.pattern.permute.xlu0 2
        %693 = vperm.xlu0 %692, %v233
        %v694 = vpop.permute.xlu0 %693
        %696 = vset.pattern.permute.xlu0 2
        %697 = vperm.xlu0 %696, %v234
        %v698 = vpop.permute.xlu0 %697
        %700 = vset.pattern.permute.xlu0 2
        %701 = vperm.xlu0 %700, %v235
        %v702 = vpop.permute.xlu0 %701
        %704 = vset.pattern.permute.xlu0 2
        %705 = vperm.xlu0 %704, %v236
        %v706 = vpop.permute.xlu0 %705
        %708 = vset.pattern.permute.xlu0 2
        %709 = vperm.xlu0 %708, %v237
        %v710 = vpop.permute.xlu0 %709
        %712 = vset.pattern.permute.xlu0 2
        %713 = vperm.xlu0 %712, %v238
        %v714 = vpop.permute.xlu0 %713
        %716 = vset.pattern.permute.xlu0 2
        %717 = vperm.xlu0 %716, %v239
        %v718 = vpop.permute.xlu0 %717
        %720 = vset.pattern.permute.xlu0 2
        %721 = vperm.xlu0 %720, %v240
        %v722 = vpop.permute.xlu0 %721
        %724 = vset.pattern.permute.xlu0 2
        %725 = vperm.xlu0 %724, %v241
        %v726 = vpop.permute.xlu0 %725
        %728 = vset.pattern.permute.xlu0 2
        %729 = vperm.xlu0 %728, %v242
        %v730 = vpop.permute.xlu0 %729
        %732 = vset.pattern.permute.xlu0 2
        %733 = vperm.xlu0 %732, %v243
        %v734 = vpop.permute.xlu0 %733
        %736 = vset.pattern.permute.xlu0 2
        %737 = vperm.xlu0 %736, %v244
        %v738 = vpop.permute.xlu0 %737
        %740 = vset.pattern.permute.xlu0 2
        %741 = vperm.xlu0 %740, %v245
        %v742 = vpop.permute.xlu0 %741
        %744 = vset.pattern.permute.xlu0 2
        %745 = vperm.xlu0 %744, %v246
        %v746 = vpop.permute.xlu0 %745
        %748 = vset.pattern.permute.xlu0 2
        %749 = vperm.xlu0 %748, %v247
        %v750 = vpop.permute.xlu0 %749
        %752 = vset.pattern.permute.xlu0 2
        %753 = vperm.xlu0 %752, %v248
        %v754 = vpop.permute.xlu0 %753
        %756 = vset.pattern.permute.xlu0 2
        %757 = vperm.xlu0 %756, %v249
        %v758 = vpop.permute.xlu0 %757
        %760 = vset.pattern.permute.xlu0 2
        %761 = vperm.xlu0 %760, %v250
        %v762 = vpop.permute.xlu0 %761
        %764 = vset.pattern.permute.xlu0 2
        %765 = vperm.xlu0 %764, %v251
        %v766 = vpop.permute.xlu0 %765
        %768 = vset.pattern.permute.xlu0 2
        %769 = vperm.xlu0 %768, %v252
        %v770 = vpop.permute.xlu0 %769
        %v772 = vlaneseq
        %v773 = vshrl.u32 %v772, 7
        %v774 = vsub.s32 2, %v773
        %v775 = vrot.slane %v253, %v774
        %v776 = vmul.f32 %v654, %v775
        %v777 = vmul.f32 %v658, %v775
        %v778 = vmul.f32 %v662, %v775
        %v779 = vmul.f32 %v666, %v775
        %v780 = vmul.f32 %v670, %v775
        %v781 = vmul.f32 %v674, %v775
        %v782 = vmul.f32 %v678, %v775
        %v783 = vmul.f32 %v682, %v775
        %v784 = vmul.f32 %v686, %v775
        %v785 = vmul.f32 %v690, %v775
        %v786 = vmul.f32 %v694, %v775
        %v787 = vmul.f32 %v698, %v775
        %v788 = vmul.f32 %v702, %v775
        %v789 = vmul.f32 %v706, %v775
        %v790 = vmul.f32 %v710, %v775
        %v791 = vmul.f32 %v714, %v775
        %v792 = vmul.f32 %v718, %v775
        %v793 = vmul.f32 %v722, %v775
        %v794 = vmul.f32 %v726, %v775
        %v795 = vmul.f32 %v730, %v775
        %v796 = vmul.f32 %v734, %v775
        %v797 = vmul.f32 %v738, %v775
        %v798 = vmul.f32 %v742, %v775
        %v799 = vmul.f32 %v746, %v775
        %v800 = vmul.f32 %v750, %v775
        %v801 = vmul.f32 %v754, %v775
        %v802 = vmul.f32 %v758, %v775
        %v803 = vmul.f32 %v762, %v775
        %v804 = vmul.f32 %v766, %v775
        %v805 = vmul.f32 %v770, %v775
        %v806 = vadd.f32 %v622, %v776
        %v807 = vadd.f32 %v623, %v777
        %v808 = vadd.f32 %v624, %v778
        %v809 = vadd.f32 %v625, %v779
        %v810 = vadd.f32 %v626, %v780
        %v811 = vadd.f32 %v627, %v781
        %v812 = vadd.f32 %v628, %v782
        %v813 = vadd.f32 %v629, %v783
        %v814 = vadd.f32 %v630, %v784
        %v815 = vadd.f32 %v631, %v785
        %v816 = vadd.f32 %v632, %v786
        %v817 = vadd.f32 %v633, %v787
        %v818 = vadd.f32 %v634, %v788
        %v819 = vadd.f32 %v635, %v789
        %v820 = vadd.f32 %v636, %v790
        %v821 = vadd.f32 %v637, %v791
        %v822 = vadd.f32 %v638, %v792
        %v823 = vadd.f32 %v639, %v793
        %v824 = vadd.f32 %v640, %v794
        %v825 = vadd.f32 %v641, %v795
        %v826 = vadd.f32 %v642, %v796
        %v827 = vadd.f32 %v643, %v797
        %v828 = vadd.f32 %v644, %v798
        %v829 = vadd.f32 %v645, %v799
        %v830 = vadd.f32 %v646, %v800
        %v831 = vadd.f32 %v647, %v801
        %v832 = vadd.f32 %v648, %v802
        %v833 = vadd.f32 %v649, %v803
        %v834 = vadd.f32 %v650, %v804
        %v835 = vadd.f32 %v651, %v805
        %836 = vset.pattern.permute.xlu0 3
        %837 = vperm.xlu0 %836, %v223
        %v838 = vpop.permute.xlu0 %837
        %840 = vset.pattern.permute.xlu0 3
        %841 = vperm.xlu0 %840, %v224
        %v842 = vpop.permute.xlu0 %841
        %844 = vset.pattern.permute.xlu0 3
        %845 = vperm.xlu0 %844, %v225
        %v846 = vpop.permute.xlu0 %845
        %848 = vset.pattern.permute.xlu0 3
        %849 = vperm.xlu0 %848, %v226
        %v850 = vpop.permute.xlu0 %849
        %852 = vset.pattern.permute.xlu0 3
        %853 = vperm.xlu0 %852, %v227
        %v854 = vpop.permute.xlu0 %853
        %856 = vset.pattern.permute.xlu0 3
        %857 = vperm.xlu0 %856, %v228
        %v858 = vpop.permute.xlu0 %857
        %860 = vset.pattern.permute.xlu0 3
        %861 = vperm.xlu0 %860, %v229
        %v862 = vpop.permute.xlu0 %861
        %864 = vset.pattern.permute.xlu0 3
        %865 = vperm.xlu0 %864, %v230
        %v866 = vpop.permute.xlu0 %865
        %868 = vset.pattern.permute.xlu0 3
        %869 = vperm.xlu0 %868, %v231
        %v870 = vpop.permute.xlu0 %869
        %872 = vset.pattern.permute.xlu0 3
        %873 = vperm.xlu0 %872, %v232
        %v874 = vpop.permute.xlu0 %873
        %876 = vset.pattern.permute.xlu0 3
        %877 = vperm.xlu0 %876, %v233
        %v878 = vpop.permute.xlu0 %877
        %880 = vset.pattern.permute.xlu0 3
        %881 = vperm.xlu0 %880, %v234
        %v882 = vpop.permute.xlu0 %881
        %884 = vset.pattern.permute.xlu0 3
        %885 = vperm.xlu0 %884, %v235
        %v886 = vpop.permute.xlu0 %885
        %888 = vset.pattern.permute.xlu0 3
        %889 = vperm.xlu0 %888, %v236
        %v890 = vpop.permute.xlu0 %889
        %892 = vset.pattern.permute.xlu0 3
        %893 = vperm.xlu0 %892, %v237
        %v894 = vpop.permute.xlu0 %893
        %896 = vset.pattern.permute.xlu0 3
        %897 = vperm.xlu0 %896, %v238
        %v898 = vpop.permute.xlu0 %897
        %900 = vset.pattern.permute.xlu0 3
        %901 = vperm.xlu0 %900, %v239
        %v902 = vpop.permute.xlu0 %901
        %904 = vset.pattern.permute.xlu0 3
        %905 = vperm.xlu0 %904, %v240
        %v906 = vpop.permute.xlu0 %905
        %908 = vset.pattern.permute.xlu0 3
        %909 = vperm.xlu0 %908, %v241
        %v910 = vpop.permute.xlu0 %909
        %912 = vset.pattern.permute.xlu0 3
        %913 = vperm.xlu0 %912, %v242
        %v914 = vpop.permute.xlu0 %913
        %916 = vset.pattern.permute.xlu0 3
        %917 = vperm.xlu0 %916, %v243
        %v918 = vpop.permute.xlu0 %917
        %920 = vset.pattern.permute.xlu0 3
        %921 = vperm.xlu0 %920, %v244
        %v922 = vpop.permute.xlu0 %921
        %924 = vset.pattern.permute.xlu0 3
        %925 = vperm.xlu0 %924, %v245
        %v926 = vpop.permute.xlu0 %925
        %928 = vset.pattern.permute.xlu0 3
        %929 = vperm.xlu0 %928, %v246
        %v930 = vpop.permute.xlu0 %929
        %932 = vset.pattern.permute.xlu0 3
        %933 = vperm.xlu0 %932, %v247
        %v934 = vpop.permute.xlu0 %933
        %936 = vset.pattern.permute.xlu0 3
        %937 = vperm.xlu0 %936, %v248
        %v938 = vpop.permute.xlu0 %937
        %940 = vset.pattern.permute.xlu0 3
        %941 = vperm.xlu0 %940, %v249
        %v942 = vpop.permute.xlu0 %941
        %944 = vset.pattern.permute.xlu0 3
        %945 = vperm.xlu0 %944, %v250
        %v946 = vpop.permute.xlu0 %945
        %948 = vset.pattern.permute.xlu0 3
        %949 = vperm.xlu0 %948, %v251
        %v950 = vpop.permute.xlu0 %949
        %952 = vset.pattern.permute.xlu0 3
        %953 = vperm.xlu0 %952, %v252
        %v954 = vpop.permute.xlu0 %953
        %v956 = vlaneseq
        %v957 = vshrl.u32 %v956, 7
        %v958 = vsub.s32 3, %v957
        %v959 = vrot.slane %v253, %v958
        %v960 = vmul.f32 %v838, %v959
        %v961 = vmul.f32 %v842, %v959
        %v962 = vmul.f32 %v846, %v959
        %v963 = vmul.f32 %v850, %v959
        %v964 = vmul.f32 %v854, %v959
        %v965 = vmul.f32 %v858, %v959
        %v966 = vmul.f32 %v862, %v959
        %v967 = vmul.f32 %v866, %v959
        %v968 = vmul.f32 %v870, %v959
        %v969 = vmul.f32 %v874, %v959
        %v970 = vmul.f32 %v878, %v959
        %v971 = vmul.f32 %v882, %v959
        %v972 = vmul.f32 %v886, %v959
        %v973 = vmul.f32 %v890, %v959
        %v974 = vmul.f32 %v894, %v959
        %v975 = vmul.f32 %v898, %v959
        %v976 = vmul.f32 %v902, %v959
        %v977 = vmul.f32 %v906, %v959
        %v978 = vmul.f32 %v910, %v959
        %v979 = vmul.f32 %v914, %v959
        %v980 = vmul.f32 %v918, %v959
        %v981 = vmul.f32 %v922, %v959
        %v982 = vmul.f32 %v926, %v959
        %v983 = vmul.f32 %v930, %v959
        %v984 = vmul.f32 %v934, %v959
        %v985 = vmul.f32 %v938, %v959
        %v986 = vmul.f32 %v942, %v959
        %v987 = vmul.f32 %v946, %v959
        %v988 = vmul.f32 %v950, %v959
        %v989 = vmul.f32 %v954, %v959
        %v990 = vadd.f32 %v806, %v960
        %v991 = vadd.f32 %v807, %v961
        %v992 = vadd.f32 %v808, %v962
        %v993 = vadd.f32 %v809, %v963
        %v994 = vadd.f32 %v810, %v964
        %v995 = vadd.f32 %v811, %v965
        %v996 = vadd.f32 %v812, %v966
        %v997 = vadd.f32 %v813, %v967
        %v998 = vadd.f32 %v814, %v968
        %v999 = vadd.f32 %v815, %v969
        %v1000 = vadd.f32 %v816, %v970
        %v1001 = vadd.f32 %v817, %v971
        %v1002 = vadd.f32 %v818, %v972
        %v1003 = vadd.f32 %v819, %v973
        %v1004 = vadd.f32 %v820, %v974
        %v1005 = vadd.f32 %v821, %v975
        %v1006 = vadd.f32 %v822, %v976
        %v1007 = vadd.f32 %v823, %v977
        %v1008 = vadd.f32 %v824, %v978
        %v1009 = vadd.f32 %v825, %v979
        %v1010 = vadd.f32 %v826, %v980
        %v1011 = vadd.f32 %v827, %v981
        %v1012 = vadd.f32 %v828, %v982
        %v1013 = vadd.f32 %v829, %v983
        %v1014 = vadd.f32 %v830, %v984
        %v1015 = vadd.f32 %v831, %v985
        %v1016 = vadd.f32 %v832, %v986
        %v1017 = vadd.f32 %v833, %v987
        %v1018 = vadd.f32 %v834, %v988
        %v1019 = vadd.f32 %v835, %v989
        %v1020 = vld [vmem:[%s2] sm:$0x1]
        %v1022 = vlaneseq
        %v1023 = vshrl.u32 %v1022, 7
        %v1024 = vsub.s32 0, %v1023
        %v1025 = vrot.slane %v1020, %v1024
        %v1027 = vadd.f32 %v990, %v1025
        %v1028 = vadd.f32 %v991, %v1025
        %v1029 = vadd.f32 %v992, %v1025
        %v1030 = vadd.f32 %v993, %v1025
        %v1031 = vadd.f32 %v994, %v1025
        %v1032 = vadd.f32 %v995, %v1025
        %v1033 = vadd.f32 %v996, %v1025
        %v1034 = vadd.f32 %v997, %v1025
        %v1035 = vadd.f32 %v998, %v1025
        %v1036 = vadd.f32 %v999, %v1025
        %v1037 = vadd.f32 %v1000, %v1025
        %v1038 = vadd.f32 %v1001, %v1025
        %v1039 = vadd.f32 %v1002, %v1025
        %v1040 = vadd.f32 %v1003, %v1025
        %v1041 = vadd.f32 %v1004, %v1025
        %v1042 = vadd.f32 %v1005, %v1025
        %v1043 = vadd.f32 %v1006, %v1025
        %v1044 = vadd.f32 %v1007, %v1025
        %v1045 = vadd.f32 %v1008, %v1025
        %v1046 = vadd.f32 %v1009, %v1025
        %v1047 = vadd.f32 %v1010, %v1025
        %v1048 = vadd.f32 %v1011, %v1025
        %v1049 = vadd.f32 %v1012, %v1025
        %v1050 = vadd.f32 %v1013, %v1025
        %v1051 = vadd.f32 %v1014, %v1025
        %v1052 = vadd.f32 %v1015, %v1025
        %v1053 = vadd.f32 %v1016, %v1025
        %v1054 = vadd.f32 %v1017, %v1025
        %v1055 = vadd.f32 %v1018, %v1025
        %v1056 = vadd.f32 %v1019, %v1025
        %v1057 = vmax.f32 %v1027, 0.0
        %v1058 = vmax.f32 %v1028, 0.0
        %v1059 = vmax.f32 %v1029, 0.0
        %v1060 = vmax.f32 %v1030, 0.0
        %v1061 = vmax.f32 %v1031, 0.0
        %v1062 = vmax.f32 %v1032, 0.0
        %v1063 = vmax.f32 %v1033, 0.0
        %v1064 = vmax.f32 %v1034, 0.0
        %v1065 = vmax.f32 %v1035, 0.0
        %v1066 = vmax.f32 %v1036, 0.0
        %v1067 = vmax.f32 %v1037, 0.0
        %v1068 = vmax.f32 %v1038, 0.0
        %v1069 = vmax.f32 %v1039, 0.0
        %v1070 = vmax.f32 %v1040, 0.0
        %v1071 = vmax.f32 %v1041, 0.0
        %v1072 = vmax.f32 %v1042, 0.0
        %v1073 = vmax.f32 %v1043, 0.0
        %v1074 = vmax.f32 %v1044, 0.0
        %v1075 = vmax.f32 %v1045, 0.0
        %v1076 = vmax.f32 %v1046, 0.0
        %v1077 = vmax.f32 %v1047, 0.0
        %v1078 = vmax.f32 %v1048, 0.0
        %v1079 = vmax.f32 %v1049, 0.0
        %v1080 = vmax.f32 %v1050, 0.0
        %v1081 = vmax.f32 %v1051, 0.0
        %v1082 = vmax.f32 %v1052, 0.0
        %v1083 = vmax.f32 %v1053, 0.0
        %v1084 = vmax.f32 %v1054, 0.0
        %v1085 = vmax.f32 %v1055, 0.0
        %v1086 = vmax.f32 %v1056, 0.0
        %v1087 = vpow.f32 %v1057, 2.5
        %v1088 = vpow.f32 %v1058, 2.5
        %v1089 = vpow.f32 %v1059, 2.5
        %v1090 = vpow.f32 %v1060, 2.5
        %v1091 = vpow.f32 %v1061, 2.5
        %v1092 = vpow.f32 %v1062, 2.5
        %v1093 = vpow.f32 %v1063, 2.5
        %v1094 = vpow.f32 %v1064, 2.5
        %v1095 = vpow.f32 %v1065, 2.5
        %v1096 = vpow.f32 %v1066, 2.5
        %v1097 = vpow.f32 %v1067, 2.5
        %v1098 = vpow.f32 %v1068, 2.5
        %v1099 = vpow.f32 %v1069, 2.5
        %v1100 = vpow.f32 %v1070, 2.5
        %v1101 = vpow.f32 %v1071, 2.5
        %v1102 = vpow.f32 %v1072, 2.5
        %v1103 = vpow.f32 %v1073, 2.5
        %v1104 = vpow.f32 %v1074, 2.5
        %v1105 = vpow.f32 %v1075, 2.5
        %v1106 = vpow.f32 %v1076, 2.5
        %v1107 = vpow.f32 %v1077, 2.5
        %v1108 = vpow.f32 %v1078, 2.5
        %v1109 = vpow.f32 %v1079, 2.5
        %v1110 = vpow.f32 %v1080, 2.5
        %v1111 = vpow.f32 %v1081, 2.5
        %v1112 = vpow.f32 %v1082, 2.5
        %v1113 = vpow.f32 %v1083, 2.5
        %v1114 = vpow.f32 %v1084, 2.5
        %v1115 = vpow.f32 %v1085, 2.5
        %v1116 = vpow.f32 %v1086, 2.5
        %vm1147 = vcmask 1046528
        %v1148 = vrot.slane %v1087, 1
        %v1149 = vrot.slane %v1088, 1
        %v1150 = vsel %vm1147, %v1148, %v1149
        %v1151 = vrot.slane %v1089, 1
        %v1152 = vrot.slane %v1090, 1
        %v1153 = vsel %vm1147, %v1151, %v1152
        %v1154 = vrot.slane %v1091, 1
        %v1155 = vrot.slane %v1092, 1
        %v1156 = vsel %vm1147, %v1154, %v1155
        %v1157 = vrot.slane %v1093, 1
        %v1158 = vrot.slane %v1094, 1
        %v1159 = vsel %vm1147, %v1157, %v1158
        %v1160 = vrot.slane %v1095, 1
        %v1161 = vrot.slane %v1096, 1
        %v1162 = vsel %vm1147, %v1160, %v1161
        %v1163 = vrot.slane %v1097, 1
        %v1164 = vrot.slane %v1098, 1
        %v1165 = vsel %vm1147, %v1163, %v1164
        %v1166 = vrot.slane %v1099, 1
        %v1167 = vrot.slane %v1100, 1
        %v1168 = vsel %vm1147, %v1166, %v1167
        %v1169 = vrot.slane %v1101, 1
        %v1170 = vrot.slane %v1102, 1
        %v1171 = vsel %vm1147, %v1169, %v1170
        %v1172 = vrot.slane %v1103, 1
        %v1173 = vrot.slane %v1104, 1
        %v1174 = vsel %vm1147, %v1172, %v1173
        %v1175 = vrot.slane %v1105, 1
        %v1176 = vrot.slane %v1106, 1
        %v1177 = vsel %vm1147, %v1175, %v1176
        %v1178 = vrot.slane %v1107, 1
        %v1179 = vrot.slane %v1108, 1
        %v1180 = vsel %vm1147, %v1178, %v1179
        %v1181 = vrot.slane %v1109, 1
        %v1182 = vrot.slane %v1110, 1
        %v1183 = vsel %vm1147, %v1181, %v1182
        %v1184 = vrot.slane %v1111, 1
        %v1185 = vrot.slane %v1112, 1
        %v1186 = vsel %vm1147, %v1184, %v1185
        %v1187 = vrot.slane %v1113, 1
        %v1188 = vrot.slane %v1114, 1
        %v1189 = vsel %vm1147, %v1187, %v1188
        %v1190 = vrot.slane %v1115, 1
        %v1191 = vrot.slane %v1116, 1
        %v1192 = vsel %vm1147, %v1190, %v1191
        %v1223 = vadd.f32 %v1087, %v1150
        %v1224 = vadd.f32 %v1088, %v1149
        %v1225 = vadd.f32 %v1089, %v1153
        %v1226 = vadd.f32 %v1090, %v1152
        %v1227 = vadd.f32 %v1091, %v1156
        %v1228 = vadd.f32 %v1092, %v1155
        %v1229 = vadd.f32 %v1093, %v1159
        %v1230 = vadd.f32 %v1094, %v1158
        %v1231 = vadd.f32 %v1095, %v1162
        %v1232 = vadd.f32 %v1096, %v1161
        %v1233 = vadd.f32 %v1097, %v1165
        %v1234 = vadd.f32 %v1098, %v1164
        %v1235 = vadd.f32 %v1099, %v1168
        %v1236 = vadd.f32 %v1100, %v1167
        %v1237 = vadd.f32 %v1101, %v1171
        %v1238 = vadd.f32 %v1102, %v1170
        %v1239 = vadd.f32 %v1103, %v1174
        %v1240 = vadd.f32 %v1104, %v1173
        %v1241 = vadd.f32 %v1105, %v1177
        %v1242 = vadd.f32 %v1106, %v1176
        %v1243 = vadd.f32 %v1107, %v1180
        %v1244 = vadd.f32 %v1108, %v1179
        %v1245 = vadd.f32 %v1109, %v1183
        %v1246 = vadd.f32 %v1110, %v1182
        %v1247 = vadd.f32 %v1111, %v1186
        %v1248 = vadd.f32 %v1112, %v1185
        %v1249 = vadd.f32 %v1113, %v1189
        %v1250 = vadd.f32 %v1114, %v1188
        %v1251 = vadd.f32 %v1115, %v1192
        %v1252 = vadd.f32 %v1116, %v1191
        %vm1253 = vcmask 1045504
        %v1254 = vrot.slane %v1087, 2
        %v1255 = vrot.slane %v1088, 2
        %v1256 = vsel %vm1253, %v1254, %v1255
        %v1257 = vrot.slane %v1089, 2
        %v1258 = vrot.slane %v1090, 2
        %v1259 = vsel %vm1253, %v1257, %v1258
        %v1260 = vrot.slane %v1091, 2
        %v1261 = vrot.slane %v1092, 2
        %v1262 = vsel %vm1253, %v1260, %v1261
        %v1263 = vrot.slane %v1093, 2
        %v1264 = vrot.slane %v1094, 2
        %v1265 = vsel %vm1253, %v1263, %v1264
        %v1266 = vrot.slane %v1095, 2
        %v1267 = vrot.slane %v1096, 2
        %v1268 = vsel %vm1253, %v1266, %v1267
        %v1269 = vrot.slane %v1097, 2
        %v1270 = vrot.slane %v1098, 2
        %v1271 = vsel %vm1253, %v1269, %v1270
        %v1272 = vrot.slane %v1099, 2
        %v1273 = vrot.slane %v1100, 2
        %v1274 = vsel %vm1253, %v1272, %v1273
        %v1275 = vrot.slane %v1101, 2
        %v1276 = vrot.slane %v1102, 2
        %v1277 = vsel %vm1253, %v1275, %v1276
        %v1278 = vrot.slane %v1103, 2
        %v1279 = vrot.slane %v1104, 2
        %v1280 = vsel %vm1253, %v1278, %v1279
        %v1281 = vrot.slane %v1105, 2
        %v1282 = vrot.slane %v1106, 2
        %v1283 = vsel %vm1253, %v1281, %v1282
        %v1284 = vrot.slane %v1107, 2
        %v1285 = vrot.slane %v1108, 2
        %v1286 = vsel %vm1253, %v1284, %v1285
        %v1287 = vrot.slane %v1109, 2
        %v1288 = vrot.slane %v1110, 2
        %v1289 = vsel %vm1253, %v1287, %v1288
        %v1290 = vrot.slane %v1111, 2
        %v1291 = vrot.slane %v1112, 2
        %v1292 = vsel %vm1253, %v1290, %v1291
        %v1293 = vrot.slane %v1113, 2
        %v1294 = vrot.slane %v1114, 2
        %v1295 = vsel %vm1253, %v1293, %v1294
        %v1296 = vrot.slane %v1115, 2
        %v1297 = vrot.slane %v1116, 2
        %v1298 = vsel %vm1253, %v1296, %v1297
        %v1329 = vadd.f32 %v1223, %v1256
        %v1330 = vadd.f32 %v1224, %v1255
        %v1331 = vadd.f32 %v1225, %v1259
        %v1332 = vadd.f32 %v1226, %v1258
        %v1333 = vadd.f32 %v1227, %v1262
        %v1334 = vadd.f32 %v1228, %v1261
        %v1335 = vadd.f32 %v1229, %v1265
        %v1336 = vadd.f32 %v1230, %v1264
        %v1337 = vadd.f32 %v1231, %v1268
        %v1338 = vadd.f32 %v1232, %v1267
        %v1339 = vadd.f32 %v1233, %v1271
        %v1340 = vadd.f32 %v1234, %v1270
        %v1341 = vadd.f32 %v1235, %v1274
        %v1342 = vadd.f32 %v1236, %v1273
        %v1343 = vadd.f32 %v1237, %v1277
        %v1344 = vadd.f32 %v1238, %v1276
        %v1345 = vadd.f32 %v1239, %v1280
        %v1346 = vadd.f32 %v1240, %v1279
        %v1347 = vadd.f32 %v1241, %v1283
        %v1348 = vadd.f32 %v1242, %v1282
        %v1349 = vadd.f32 %v1243, %v1286
        %v1350 = vadd.f32 %v1244, %v1285
        %v1351 = vadd.f32 %v1245, %v1289
        %v1352 = vadd.f32 %v1246, %v1288
        %v1353 = vadd.f32 %v1247, %v1292
        %v1354 = vadd.f32 %v1248, %v1291
        %v1355 = vadd.f32 %v1249, %v1295
        %v1356 = vadd.f32 %v1250, %v1294
        %v1357 = vadd.f32 %v1251, %v1298
        %v1358 = vadd.f32 %v1252, %v1297
        %vm1359 = vcmask 1044480
        %v1360 = vrot.slane %v1087, 3
        %v1361 = vrot.slane %v1088, 3
        %v1362 = vsel %vm1359, %v1360, %v1361
        %v1363 = vrot.slane %v1089, 3
        %v1364 = vrot.slane %v1090, 3
        %v1365 = vsel %vm1359, %v1363, %v1364
        %v1366 = vrot.slane %v1091, 3
        %v1367 = vrot.slane %v1092, 3
        %v1368 = vsel %vm1359, %v1366, %v1367
        %v1369 = vrot.slane %v1093, 3
        %v1370 = vrot.slane %v1094, 3
        %v1371 = vsel %vm1359, %v1369, %v1370
        %v1372 = vrot.slane %v1095, 3
        %v1373 = vrot.slane %v1096, 3
        %v1374 = vsel %vm1359, %v1372, %v1373
        %v1375 = vrot.slane %v1097, 3
        %v1376 = vrot.slane %v1098, 3
        %v1377 = vsel %vm1359, %v1375, %v1376
        %v1378 = vrot.slane %v1099, 3
        %v1379 = vrot.slane %v1100, 3
        %v1380 = vsel %vm1359, %v1378, %v1379
        %v1381 = vrot.slane %v1101, 3
        %v1382 = vrot.slane %v1102, 3
        %v1383 = vsel %vm1359, %v1381, %v1382
        %v1384 = vrot.slane %v1103, 3
        %v1385 = vrot.slane %v1104, 3
        %v1386 = vsel %vm1359, %v1384, %v1385
        %v1387 = vrot.slane %v1105, 3
        %v1388 = vrot.slane %v1106, 3
        %v1389 = vsel %vm1359, %v1387, %v1388
        %v1390 = vrot.slane %v1107, 3
        %v1391 = vrot.slane %v1108, 3
        %v1392 = vsel %vm1359, %v1390, %v1391
        %v1393 = vrot.slane %v1109, 3
        %v1394 = vrot.slane %v1110, 3
        %v1395 = vsel %vm1359, %v1393, %v1394
        %v1396 = vrot.slane %v1111, 3
        %v1397 = vrot.slane %v1112, 3
        %v1398 = vsel %vm1359, %v1396, %v1397
        %v1399 = vrot.slane %v1113, 3
        %v1400 = vrot.slane %v1114, 3
        %v1401 = vsel %vm1359, %v1399, %v1400
        %v1402 = vrot.slane %v1115, 3
        %v1403 = vrot.slane %v1116, 3
        %v1404 = vsel %vm1359, %v1402, %v1403
        %v1435 = vadd.f32 %v1329, %v1362
        %v1436 = vadd.f32 %v1330, %v1361
        %v1437 = vadd.f32 %v1331, %v1365
        %v1438 = vadd.f32 %v1332, %v1364
        %v1439 = vadd.f32 %v1333, %v1368
        %v1440 = vadd.f32 %v1334, %v1367
        %v1441 = vadd.f32 %v1335, %v1371
        %v1442 = vadd.f32 %v1336, %v1370
        %v1443 = vadd.f32 %v1337, %v1374
        %v1444 = vadd.f32 %v1338, %v1373
        %v1445 = vadd.f32 %v1339, %v1377
        %v1446 = vadd.f32 %v1340, %v1376
        %v1447 = vadd.f32 %v1341, %v1380
        %v1448 = vadd.f32 %v1342, %v1379
        %v1449 = vadd.f32 %v1343, %v1383
        %v1450 = vadd.f32 %v1344, %v1382
        %v1451 = vadd.f32 %v1345, %v1386
        %v1452 = vadd.f32 %v1346, %v1385
        %v1453 = vadd.f32 %v1347, %v1389
        %v1454 = vadd.f32 %v1348, %v1388
        %v1455 = vadd.f32 %v1349, %v1392
        %v1456 = vadd.f32 %v1350, %v1391
        %v1457 = vadd.f32 %v1351, %v1395
        %v1458 = vadd.f32 %v1352, %v1394
        %v1459 = vadd.f32 %v1353, %v1398
        %v1460 = vadd.f32 %v1354, %v1397
        %v1461 = vadd.f32 %v1355, %v1401
        %v1462 = vadd.f32 %v1356, %v1400
        %v1463 = vadd.f32 %v1357, %v1404
        %v1464 = vadd.f32 %v1358, %v1403
        %vm1465 = vcmask 1043456
        %v1466 = vrot.slane %v1087, 4
        %v1467 = vrot.slane %v1088, 4
        %v1468 = vsel %vm1465, %v1466, %v1467
        %v1469 = vrot.slane %v1089, 4
        %v1470 = vrot.slane %v1090, 4
        %v1471 = vsel %vm1465, %v1469, %v1470
        %v1472 = vrot.slane %v1091, 4
        %v1473 = vrot.slane %v1092, 4
        %v1474 = vsel %vm1465, %v1472, %v1473
        %v1475 = vrot.slane %v1093, 4
        %v1476 = vrot.slane %v1094, 4
        %v1477 = vsel %vm1465, %v1475, %v1476
        %v1478 = vrot.slane %v1095, 4
        %v1479 = vrot.slane %v1096, 4
        %v1480 = vsel %vm1465, %v1478, %v1479
        %v1481 = vrot.slane %v1097, 4
        %v1482 = vrot.slane %v1098, 4
        %v1483 = vsel %vm1465, %v1481, %v1482
        %v1484 = vrot.slane %v1099, 4
        %v1485 = vrot.slane %v1100, 4
        %v1486 = vsel %vm1465, %v1484, %v1485
        %v1487 = vrot.slane %v1101, 4
        %v1488 = vrot.slane %v1102, 4
        %v1489 = vsel %vm1465, %v1487, %v1488
        %v1490 = vrot.slane %v1103, 4
        %v1491 = vrot.slane %v1104, 4
        %v1492 = vsel %vm1465, %v1490, %v1491
        %v1493 = vrot.slane %v1105, 4
        %v1494 = vrot.slane %v1106, 4
        %v1495 = vsel %vm1465, %v1493, %v1494
        %v1496 = vrot.slane %v1107, 4
        %v1497 = vrot.slane %v1108, 4
        %v1498 = vsel %vm1465, %v1496, %v1497
        %v1499 = vrot.slane %v1109, 4
        %v1500 = vrot.slane %v1110, 4
        %v1501 = vsel %vm1465, %v1499, %v1500
        %v1502 = vrot.slane %v1111, 4
        %v1503 = vrot.slane %v1112, 4
        %v1504 = vsel %vm1465, %v1502, %v1503
        %v1505 = vrot.slane %v1113, 4
        %v1506 = vrot.slane %v1114, 4
        %v1507 = vsel %vm1465, %v1505, %v1506
        %v1508 = vrot.slane %v1115, 4
        %v1509 = vrot.slane %v1116, 4
        %v1510 = vsel %vm1465, %v1508, %v1509
        %v1541 = vadd.f32 %v1435, %v1468
        %v1542 = vadd.f32 %v1436, %v1467
        %v1543 = vadd.f32 %v1437, %v1471
        %v1544 = vadd.f32 %v1438, %v1470
        %v1545 = vadd.f32 %v1439, %v1474
        %v1546 = vadd.f32 %v1440, %v1473
        %v1547 = vadd.f32 %v1441, %v1477
        %v1548 = vadd.f32 %v1442, %v1476
        %v1549 = vadd.f32 %v1443, %v1480
        %v1550 = vadd.f32 %v1444, %v1479
        %v1551 = vadd.f32 %v1445, %v1483
        %v1552 = vadd.f32 %v1446, %v1482
        %v1553 = vadd.f32 %v1447, %v1486
        %v1554 = vadd.f32 %v1448, %v1485
        %v1555 = vadd.f32 %v1449, %v1489
        %v1556 = vadd.f32 %v1450, %v1488
        %v1557 = vadd.f32 %v1451, %v1492
        %v1558 = vadd.f32 %v1452, %v1491
        %v1559 = vadd.f32 %v1453, %v1495
        %v1560 = vadd.f32 %v1454, %v1494
        %v1561 = vadd.f32 %v1455, %v1498
        %v1562 = vadd.f32 %v1456, %v1497
        %v1563 = vadd.f32 %v1457, %v1501
        %v1564 = vadd.f32 %v1458, %v1500
        %v1565 = vadd.f32 %v1459, %v1504
        %v1566 = vadd.f32 %v1460, %v1503
        %v1567 = vadd.f32 %v1461, %v1507
        %v1568 = vadd.f32 %v1462, %v1506
        %v1569 = vadd.f32 %v1463, %v1510
        %v1570 = vadd.f32 %v1464, %v1509
        %v1571 = vadd.f32 %v1541, %v1543
        %v1572 = vadd.f32 %v1542, %v1544
        %v1573 = vadd.f32 %v1543, %v1545
        %v1574 = vadd.f32 %v1544, %v1546
        %v1575 = vadd.f32 %v1545, %v1547
        %v1576 = vadd.f32 %v1546, %v1548
        %v1577 = vadd.f32 %v1547, %v1549
        %v1578 = vadd.f32 %v1548, %v1550
        %v1579 = vadd.f32 %v1549, %v1551
        %v1580 = vadd.f32 %v1550, %v1552
        %v1581 = vadd.f32 %v1551, %v1553
        %v1582 = vadd.f32 %v1552, %v1554
        %v1583 = vadd.f32 %v1553, %v1555
        %v1584 = vadd.f32 %v1554, %v1556
        %v1585 = vadd.f32 %v1555, %v1557
        %v1586 = vadd.f32 %v1556, %v1558
        %v1587 = vadd.f32 %v1557, %v1559
        %v1588 = vadd.f32 %v1558, %v1560
        %v1589 = vadd.f32 %v1559, %v1561
        %v1590 = vadd.f32 %v1560, %v1562
        %v1591 = vadd.f32 %v1561, %v1563
        %v1592 = vadd.f32 %v1562, %v1564
        %v1593 = vadd.f32 %v1571, %v1545
        %v1594 = vadd.f32 %v1572, %v1546
        %v1595 = vadd.f32 %v1573, %v1547
        %v1596 = vadd.f32 %v1574, %v1548
        %v1597 = vadd.f32 %v1575, %v1549
        %v1598 = vadd.f32 %v1576, %v1550
        %v1599 = vadd.f32 %v1577, %v1551
        %v1600 = vadd.f32 %v1578, %v1552
        %v1601 = vadd.f32 %v1579, %v1553
        %v1602 = vadd.f32 %v1580, %v1554
        %v1603 = vadd.f32 %v1581, %v1555
        %v1604 = vadd.f32 %v1582, %v1556
        %v1605 = vadd.f32 %v1583, %v1557
        %v1606 = vadd.f32 %v1584, %v1558
        %v1607 = vadd.f32 %v1585, %v1559
        %v1608 = vadd.f32 %v1586, %v1560
        %v1609 = vadd.f32 %v1587, %v1561
        %v1610 = vadd.f32 %v1588, %v1562
        %v1611 = vadd.f32 %v1589, %v1563
        %v1612 = vadd.f32 %v1590, %v1564
        %v1613 = vadd.f32 %v1591, %v1565
        %v1614 = vadd.f32 %v1592, %v1566
        %v1615 = vadd.f32 %v1593, %v1547
        %v1616 = vadd.f32 %v1594, %v1548
        %v1617 = vadd.f32 %v1595, %v1549
        %v1618 = vadd.f32 %v1596, %v1550
        %v1619 = vadd.f32 %v1597, %v1551
        %v1620 = vadd.f32 %v1598, %v1552
        %v1621 = vadd.f32 %v1599, %v1553
        %v1622 = vadd.f32 %v1600, %v1554
        %v1623 = vadd.f32 %v1601, %v1555
        %v1624 = vadd.f32 %v1602, %v1556
        %v1625 = vadd.f32 %v1603, %v1557
        %v1626 = vadd.f32 %v1604, %v1558
        %v1627 = vadd.f32 %v1605, %v1559
        %v1628 = vadd.f32 %v1606, %v1560
        %v1629 = vadd.f32 %v1607, %v1561
        %v1630 = vadd.f32 %v1608, %v1562
        %v1631 = vadd.f32 %v1609, %v1563
        %v1632 = vadd.f32 %v1610, %v1564
        %v1633 = vadd.f32 %v1611, %v1565
        %v1634 = vadd.f32 %v1612, %v1566
        %v1635 = vadd.f32 %v1613, %v1567
        %v1636 = vadd.f32 %v1614, %v1568
        %v1637 = vadd.f32 %v1615, %v1549
        %v1638 = vadd.f32 %v1616, %v1550
        %v1639 = vadd.f32 %v1617, %v1551
        %v1640 = vadd.f32 %v1618, %v1552
        %v1641 = vadd.f32 %v1619, %v1553
        %v1642 = vadd.f32 %v1620, %v1554
        %v1643 = vadd.f32 %v1621, %v1555
        %v1644 = vadd.f32 %v1622, %v1556
        %v1645 = vadd.f32 %v1623, %v1557
        %v1646 = vadd.f32 %v1624, %v1558
        %v1647 = vadd.f32 %v1625, %v1559
        %v1648 = vadd.f32 %v1626, %v1560
        %v1649 = vadd.f32 %v1627, %v1561
        %v1650 = vadd.f32 %v1628, %v1562
        %v1651 = vadd.f32 %v1629, %v1563
        %v1652 = vadd.f32 %v1630, %v1564
        %v1653 = vadd.f32 %v1631, %v1565
        %v1654 = vadd.f32 %v1632, %v1566
        %v1655 = vadd.f32 %v1633, %v1567
        %v1656 = vadd.f32 %v1634, %v1568
        %v1657 = vadd.f32 %v1635, %v1569
        %v1658 = vadd.f32 %v1636, %v1570
        %v1659 = vpow.f32 %v1637, 0.4
        %v1660 = vpow.f32 %v1638, 0.4
        %v1661 = vpow.f32 %v1639, 0.4
        %v1662 = vpow.f32 %v1640, 0.4
        %v1663 = vpow.f32 %v1641, 0.4
        %v1664 = vpow.f32 %v1642, 0.4
        %v1665 = vpow.f32 %v1643, 0.4
        %v1666 = vpow.f32 %v1644, 0.4
        %v1667 = vpow.f32 %v1645, 0.4
        %v1668 = vpow.f32 %v1646, 0.4
        %v1669 = vpow.f32 %v1647, 0.4
        %v1670 = vpow.f32 %v1648, 0.4
        %v1671 = vpow.f32 %v1649, 0.4
        %v1672 = vpow.f32 %v1650, 0.4
        %v1673 = vpow.f32 %v1651, 0.4
        %v1674 = vpow.f32 %v1652, 0.4
        %v1675 = vpow.f32 %v1653, 0.4
        %v1676 = vpow.f32 %v1654, 0.4
        %v1677 = vpow.f32 %v1655, 0.4
        %v1678 = vpow.f32 %v1656, 0.4
        %v1679 = vpow.f32 %v1657, 0.4
        %v1680 = vpow.f32 %v1658, 0.4
        %v1681 = vmul.f32 %v1659, 0.27594593
        %v1682 = vmul.f32 %v1660, 0.27594593
        %v1683 = vmul.f32 %v1661, 0.27594593
        %v1684 = vmul.f32 %v1662, 0.27594593
        %v1685 = vmul.f32 %v1663, 0.27594593
        %v1686 = vmul.f32 %v1664, 0.27594593
        %v1687 = vmul.f32 %v1665, 0.27594593
        %v1688 = vmul.f32 %v1666, 0.27594593
        %v1689 = vmul.f32 %v1667, 0.27594593
        %v1690 = vmul.f32 %v1668, 0.27594593
        %v1691 = vmul.f32 %v1669, 0.27594593
        %v1692 = vmul.f32 %v1670, 0.27594593
        %v1693 = vmul.f32 %v1671, 0.27594593
        %v1694 = vmul.f32 %v1672, 0.27594593
        %v1695 = vmul.f32 %v1673, 0.27594593
        %v1696 = vmul.f32 %v1674, 0.27594593
        %v1697 = vmul.f32 %v1675, 0.27594593
        %v1698 = vmul.f32 %v1676, 0.27594593
        %v1699 = vmul.f32 %v1677, 0.27594593
        %v1700 = vmul.f32 %v1678, 0.27594593
        %v1701 = vmul.f32 %v1679, 0.27594593
        %v1702 = vmul.f32 %v1680, 0.27594593
        %v1703 = vmul.f32 %v1681, 0.5
        %v1704 = vmul.f32 %v1682, 0.5
        %v1705 = vmul.f32 %v1683, 0.5
        %v1706 = vmul.f32 %v1684, 0.5
        %v1707 = vmul.f32 %v1685, 0.5
        %v1708 = vmul.f32 %v1686, 0.5
        %v1709 = vmul.f32 %v1687, 0.5
        %v1710 = vmul.f32 %v1688, 0.5
        %v1711 = vmul.f32 %v1689, 0.5
        %v1712 = vmul.f32 %v1690, 0.5
        %v1713 = vmul.f32 %v1691, 0.5
        %v1714 = vmul.f32 %v1692, 0.5
        %v1715 = vmul.f32 %v1693, 0.5
        %v1716 = vmul.f32 %v1694, 0.5
        %v1717 = vmul.f32 %v1695, 0.5
        %v1718 = vmul.f32 %v1696, 0.5
        %v1719 = vmul.f32 %v1697, 0.5
        %v1720 = vmul.f32 %v1698, 0.5
        %v1721 = vmul.f32 %v1699, 0.5
        %v1722 = vmul.f32 %v1700, 0.5
        %v1723 = vmul.f32 %v1701, 0.5
        %v1724 = vmul.f32 %v1702, 0.5
        %v1725 = vmul.f32 %v1061, 0.5
        %v1726 = vmul.f32 %v1062, 0.5
        %v1727 = vmul.f32 %v1063, 0.5
        %v1728 = vmul.f32 %v1064, 0.5
        %v1729 = vmul.f32 %v1065, 0.5
        %v1730 = vmul.f32 %v1066, 0.5
        %v1731 = vmul.f32 %v1067, 0.5
        %v1732 = vmul.f32 %v1068, 0.5
        %v1733 = vmul.f32 %v1069, 0.5
        %v1734 = vmul.f32 %v1070, 0.5
        %v1735 = vmul.f32 %v1071, 0.5
        %v1736 = vmul.f32 %v1072, 0.5
        %v1737 = vmul.f32 %v1073, 0.5
        %v1738 = vmul.f32 %v1074, 0.5
        %v1739 = vmul.f32 %v1075, 0.5
        %v1740 = vmul.f32 %v1076, 0.5
        %v1741 = vmul.f32 %v1077, 0.5
        %v1742 = vmul.f32 %v1078, 0.5
        %v1743 = vmul.f32 %v1079, 0.5
        %v1744 = vmul.f32 %v1080, 0.5
        %v1745 = vmul.f32 %v1081, 0.5
        %v1746 = vmul.f32 %v1082, 0.5
        %v1769 = vrot.slane %v1725, 2
        %v1770 = vrot.slane %v1726, 2
        %v1771 = vsel %vm1253, %v1769, %v1770
        %v1772 = vrot.slane %v1727, 2
        %v1773 = vrot.slane %v1728, 2
        %v1774 = vsel %vm1253, %v1772, %v1773
        %v1775 = vrot.slane %v1729, 2
        %v1776 = vrot.slane %v1730, 2
        %v1777 = vsel %vm1253, %v1775, %v1776
        %v1778 = vrot.slane %v1731, 2
        %v1779 = vrot.slane %v1732, 2
        %v1780 = vsel %vm1253, %v1778, %v1779
        %v1781 = vrot.slane %v1733, 2
        %v1782 = vrot.slane %v1734, 2
        %v1783 = vsel %vm1253, %v1781, %v1782
        %v1784 = vrot.slane %v1735, 2
        %v1785 = vrot.slane %v1736, 2
        %v1786 = vsel %vm1253, %v1784, %v1785
        %v1787 = vrot.slane %v1737, 2
        %v1788 = vrot.slane %v1738, 2
        %v1789 = vsel %vm1253, %v1787, %v1788
        %v1790 = vrot.slane %v1739, 2
        %v1791 = vrot.slane %v1740, 2
        %v1792 = vsel %vm1253, %v1790, %v1791
        %v1793 = vrot.slane %v1741, 2
        %v1794 = vrot.slane %v1742, 2
        %v1795 = vsel %vm1253, %v1793, %v1794
        %v1796 = vrot.slane %v1743, 2
        %v1797 = vrot.slane %v1744, 2
        %v1798 = vsel %vm1253, %v1796, %v1797
        %v1799 = vrot.slane %v1745, 2
        %v1800 = vrot.slane %v1746, 2
        %v1801 = vsel %vm1253, %v1799, %v1800
        %v1824 = vadd.f32 %v1703, %v1771
        %v1825 = vadd.f32 %v1704, %v1770
        %v1826 = vadd.f32 %v1705, %v1774
        %v1827 = vadd.f32 %v1706, %v1773
        %v1828 = vadd.f32 %v1707, %v1777
        %v1829 = vadd.f32 %v1708, %v1776
        %v1830 = vadd.f32 %v1709, %v1780
        %v1831 = vadd.f32 %v1710, %v1779
        %v1832 = vadd.f32 %v1711, %v1783
        %v1833 = vadd.f32 %v1712, %v1782
        %v1834 = vadd.f32 %v1713, %v1786
        %v1835 = vadd.f32 %v1714, %v1785
        %v1836 = vadd.f32 %v1715, %v1789
        %v1837 = vadd.f32 %v1716, %v1788
        %v1838 = vadd.f32 %v1717, %v1792
        %v1839 = vadd.f32 %v1718, %v1791
        %v1840 = vadd.f32 %v1719, %v1795
        %v1841 = vadd.f32 %v1720, %v1794
        %v1842 = vadd.f32 %v1721, %v1798
        %v1843 = vadd.f32 %v1722, %v1797
        %v1844 = vadd.f32 %v1723, %v1801
        %v1845 = vadd.f32 %v1724, %v1800
        %v1846 = vmax.f32 %v1824, 1e-08
        %v1847 = vmax.f32 %v1825, 1e-08
        %v1848 = vmax.f32 %v1826, 1e-08
        %v1849 = vmax.f32 %v1827, 1e-08
        %v1850 = vmax.f32 %v1828, 1e-08
        %v1851 = vmax.f32 %v1829, 1e-08
        %v1852 = vmax.f32 %v1830, 1e-08
        %v1853 = vmax.f32 %v1831, 1e-08
        %v1854 = vmax.f32 %v1832, 1e-08
        %v1855 = vmax.f32 %v1833, 1e-08
        %v1856 = vmax.f32 %v1834, 1e-08
        %v1857 = vmax.f32 %v1835, 1e-08
        %v1858 = vmax.f32 %v1836, 1e-08
        %v1859 = vmax.f32 %v1837, 1e-08
        %v1860 = vmax.f32 %v1838, 1e-08
        %v1861 = vmax.f32 %v1839, 1e-08
        %v1862 = vmax.f32 %v1840, 1e-08
        %v1863 = vmax.f32 %v1841, 1e-08
        %v1864 = vmax.f32 %v1842, 1e-08
        %v1865 = vmax.f32 %v1843, 1e-08
        %v1866 = vmax.f32 %v1844, 1e-08
        %v1867 = vmax.f32 %v1845, 1e-08
        %v1868 = vpow.f32 %v1846, 4.6
        %v1869 = vpow.f32 %v1847, 4.6
        %v1870 = vpow.f32 %v1848, 4.6
        %v1871 = vpow.f32 %v1849, 4.6
        %v1872 = vpow.f32 %v1850, 4.6
        %v1873 = vpow.f32 %v1851, 4.6
        %v1874 = vpow.f32 %v1852, 4.6
        %v1875 = vpow.f32 %v1853, 4.6
        %v1876 = vpow.f32 %v1854, 4.6
        %v1877 = vpow.f32 %v1855, 4.6
        %v1878 = vpow.f32 %v1856, 4.6
        %v1879 = vpow.f32 %v1857, 4.6
        %v1880 = vpow.f32 %v1858, 4.6
        %v1881 = vpow.f32 %v1859, 4.6
        %v1882 = vpow.f32 %v1860, 4.6
        %v1883 = vpow.f32 %v1861, 4.6
        %v1884 = vpow.f32 %v1862, 4.6
        %v1885 = vpow.f32 %v1863, 4.6
        %v1886 = vpow.f32 %v1864, 4.6
        %v1887 = vpow.f32 %v1865, 4.6
        %v1888 = vpow.f32 %v1866, 4.6
        %v1889 = vpow.f32 %v1867, 4.6
        %vm1890 = vcmask 523264
        %v1891 = vsel %vm1890, %v1868, 0.0
        %v1892 = vsel %vm1890, %v1870, 0.0
        %v1893 = vadd.f32 %v1891, %v1892
        %v1894 = vsel %vm1890, %v1872, 0.0
        %v1895 = vadd.f32 %v1893, %v1894
        %v1896 = vsel %vm1890, %v1874, 0.0
        %v1897 = vadd.f32 %v1895, %v1896
        %v1898 = vsel %vm1890, %v1876, 0.0
        %v1899 = vadd.f32 %v1897, %v1898
        %v1900 = vsel %vm1890, %v1878, 0.0
        %v1901 = vadd.f32 %v1899, %v1900
        %v1902 = vsel %vm1890, %v1880, 0.0
        %v1903 = vadd.f32 %v1901, %v1902
        %v1904 = vsel %vm1890, %v1882, 0.0
        %v1905 = vadd.f32 %v1903, %v1904
        %v1906 = vsel %vm1890, %v1884, 0.0
        %v1907 = vadd.f32 %v1905, %v1906
        %v1908 = vsel %vm1890, %v1886, 0.0
        %v1909 = vadd.f32 %v1907, %v1908
        %v1910 = vsel %vm1890, %v1888, 0.0
        %v1911 = vadd.f32 %v1909, %v1910
        %vm1912 = vcmask 518144
        %v1913 = vsel %vm1912, %v1869, 0.0
        %v1914 = vsel %vm1912, %v1871, 0.0
        %v1915 = vadd.f32 %v1913, %v1914
        %v1916 = vsel %vm1912, %v1873, 0.0
        %v1917 = vadd.f32 %v1915, %v1916
        %v1918 = vsel %vm1912, %v1875, 0.0
        %v1919 = vadd.f32 %v1917, %v1918
        %v1920 = vsel %vm1912, %v1877, 0.0
        %v1921 = vadd.f32 %v1919, %v1920
        %v1922 = vsel %vm1912, %v1879, 0.0
        %v1923 = vadd.f32 %v1921, %v1922
        %v1924 = vsel %vm1912, %v1881, 0.0
        %v1925 = vadd.f32 %v1923, %v1924
        %v1926 = vsel %vm1912, %v1883, 0.0
        %v1927 = vadd.f32 %v1925, %v1926
        %v1928 = vsel %vm1912, %v1885, 0.0
        %v1929 = vadd.f32 %v1927, %v1928
        %v1930 = vsel %vm1912, %v1887, 0.0
        %v1931 = vadd.f32 %v1929, %v1930
        %v1932 = vsel %vm1912, %v1889, 0.0
        %v1933 = vadd.f32 %v1931, %v1932
        %v1934 = vsel %vm1890, %v1911, 0.0
        %v1935 = vsel %vm1912, %v1933, 0.0
        %v1936 = vadd.f32 %v1934, %v1935
        %v1937 = vrot.slane %v1936, 4
        %v1938 = vadd.f32 %v1936, %v1937
        %v1939 = vrot.slane %v1938, 2
        %v1940 = vadd.f32 %v1938, %v1939
        %v1941 = vrot.slane %v1940, 1
        %v1942 = vadd.f32 %v1940, %v1941
        %v1943 = vmul.f32 %v1942, 0.008264462
        %v1944 = vpow.f32 %v1943, 0.2173913
        %v1945 = vmul.f32 %v1944, %v1944
        %v1946 = vsel %vm1890, %v1945, 0.0
        %1947 = vadd.xlane.f32.xlu0 %v1946
        %v1948 = vpop.xlane.xlu0 %1947
        %v1949 = vmax.f32 %v1948, 1e-24
        %v1950 = vrsqrt.pop %v1949
        %v1951 = vmul.f32 %v1944, %v1950
        %v1952 = vpack.c.bf16 %v1951, %v1951
        %v1953 = vld [vmem:[%s3] sm:$0xff]
        %v1954 = vld [vmem:[%s3 + $0x8] sm:$0xff]
        %v1955 = vld [vmem:[%s3 + $0x10] sm:$0xff]
        %v1956 = vld [vmem:[%s3 + $0x18] sm:$0xff]
        %v1957 = vld [vmem:[%s3 + $0x20] sm:$0xff]
        %v1958 = vld [vmem:[%s3 + $0x28] sm:$0xff]
        %v1959 = vld [vmem:[%s3 + $0x30] sm:$0xff]
        %v1960 = vld [vmem:[%s3 + $0x38] sm:$0xff]
        %v1961 = vpack.c.bf16 %v1954, %v1953
        %v1962 = vpack.c.bf16 %v1956, %v1955
        %v1963 = vpack.c.bf16 %v1958, %v1957
        %v1964 = vpack.c.bf16 %v1960, %v1959
        %v1965 = vld [vmem:[%s4] sm:$0x1]
        %v1967 = vsel %vm1890, %v1952, 0
        %1969 = vmatprep.subr.bf16.mxu0 0
        %1970 = vmatpush1.bf16.msra.mxu0 %v1961
        %1971 = vmatprep.subr.bf16.mxu0 0
        %1972 = vmatpush1.bf16.msra.mxu0 %v1962
        %1973 = vmatprep.subr.bf16.mxu0 0
        %1974 = vmatpush1.bf16.msra.mxu0 %v1963
        %1975 = vmatprep.subr.bf16.mxu0 0
        %1976 = vmatpush1.bf16.msra.mxu0 %v1964
        %1977 = vmatprep.subr.bf16.mxu0 0
        %1978 = vmatpush1.bf16.msra.mxu0 0
        %1979 = vmatprep.subr.bf16.mxu0 0
        %1980 = vmatpush1.bf16.msra.mxu0 0
        %1981 = vmatprep.subr.bf16.mxu0 0
        %1982 = vmatpush1.bf16.msra.mxu0 0
        %1983 = vmatprep.subr.bf16.mxu0 0
        %1984 = vmatpush1.bf16.msra.mxu0 0
        %1985 = vmatprep.subr.bf16.mxu0 0
        %1986 = vmatpush1.bf16.msra.mxu0 0
        %1987 = vmatprep.subr.bf16.mxu0 0
        %1988 = vmatpush1.bf16.msra.mxu0 0
        %1989 = vmatprep.subr.bf16.mxu0 0
        %1990 = vmatpush1.bf16.msra.mxu0 0
        %1991 = vmatprep.subr.bf16.mxu0 0
        %1992 = vmatpush1.bf16.msra.mxu0 0
        %1993 = vmatprep.subr.bf16.mxu0 0
        %1994 = vmatpush1.bf16.msra.mxu0 0
        %1995 = vmatprep.subr.bf16.mxu0 0
        %1996 = vmatpush1.bf16.msra.mxu0 0
        %1997 = vmatprep.subr.bf16.mxu0 0
        %1998 = vmatpush1.bf16.msra.mxu0 0
        %1999 = vmatprep.subr.bf16.mxu0 0
        %2000 = vmatpush1.bf16.msra.mxu0 0
        %2001 = vmatprep.mubr.bf16.mxu0 0
        %2002 = vmatmul.mubr.bf16.gmra.mrb[0].mxu0 %v1967
        %v2003 = vpop.f32.mrb[0].mxu0
        %v2004 = vadd.f32 %v1965, %v2003
        %v2005 = vpop.f32.mrb[0].mxu0
        %v2006 = vpop.f32.mrb[0].mxu0
        %v2007 = vpop.f32.mrb[0].mxu0
        %2008 = vdwg.mxu0
        %v2009 = vmul.f32 %v2004, %v2004
        %vm2010 = vcmask 253952
        %v2011 = vsel %vm2010, %v2009, 0.0
        %2012 = vadd.xlane.f32.xlu0 %v2011
        %v2013 = vpop.xlane.xlu0 %2012
        %v2014 = vmax.f32 %v2013, 1e-24
        %v2015 = vrsqrt.pop %v2014
        %v2016 = vmul.f32 %v2004, %v2015
        %2017 = vst.msk [vmem:[%s216] sm:$0x1] %vm2010, %v2016
        %s2018 = sand.u32 %s137, 1
        %s2019 = scalar_lea.sflag [#allocation3], %s2018
        %s2020 = sand.u32 %s137, 1
        %s2021 = scalar_lea.vmem [#allocation2], %s2020
        // Predicated region
        $region41: #{tpu_custom_call.1} parent=39 // pred_check
          %p2022 = pneg %p147
        $region42: #{tpu_custom_call.1} parent=39 // pred_check_branch
          %2024 = sbr.rel (%p2022) target = $region44
        $region43: #{tpu_custom_call.1} parent=39 // pred_region
          %s2026 = ssub.s32 16, 16
          %2027 = vsyncadd %s2019, %s2026
          %s2028 = smul.addr %s19, 16
          %s2029 = scalar_lea.hbm %s5, %s2028
          %s2031 = sshll.u32 %s2021, 4
          %s2032 = int_to_ptr.vmem [resolvable:$true] %s2031
          %2034 = dma.vmem_to_hbm [thread:$0]  %s2032, 16, %s2029, %s2019
        $region44: #{tpu_custom_call.1} parent=39 // pred_fallthru
          _
      $region40: #{tpu_custom_call.1} parent=5 // pred_fallthru
        _
      %p2035 = scmp.le.s32.totalorder 2, %s14
      // Predicated region
      $region45: #{tpu_custom_call.1} parent=5 // pred_check
        %p2036 = pneg %p2035
      $region46: #{tpu_custom_call.1} parent=5 // pred_check_branch
        %2038 = sbr.rel (%p2036) target = $region48
      $region47: #{tpu_custom_call.1} parent=5 // pred_region
        %s2039 = ssub.s32 %s14, 2
        // Predicated region
        $region49: #{tpu_custom_call.1} parent=47 // pred_check
          %p2040 = pneg %p153
        $region50: #{tpu_custom_call.1} parent=47 // pred_check_branch
          %2042 = sbr.rel (%p2040) target = $region52
        $region51: #{tpu_custom_call.1} parent=47 // pred_region
          %s2043 = sand.u32 %s138, 1
          %s2044 = scalar_lea.sflag [#allocation3], %s2043
          %s2045 = sand.u32 %s138, 1
          %s2046 = scalar_lea.vmem [#allocation2], %s2045
          %2047 = dma.done %s2044, 16
        $region52: #{tpu_custom_call.1} parent=47 // pred_fallthru
          _
      $region48: #{tpu_custom_call.1} parent=5 // pred_fallthru
        _
    $region6: #{tpu_custom_call.1} parent=1 // loop_footer
      %s18 = sadd.s32 1, %s14
    $region7: #{tpu_custom_call.1} parent=1 // loop_footer_branch
      %13 = sbr.rel target = $region3
    $region8: #{tpu_custom_call.1} parent=1 // loop_exit
      _
    %2048 = vsyncpa [#allocation3], 1
    %s2049 = scalar_lea.sflag [#allocation3], 1
    %2050 = vsyncpa %s2049, 1

</llo_original>
